<compile_context>
chip_gen: v7x
topology: tpu7x:2x2x1
jax: 0.10.0
libtpu: 0.0.40
codegen_flags: <defaults>
</compile_context>

<pallas_src>
import numpy as np
import jax
import jax.numpy as jnp
from jax.experimental import pallas as pl
from jax.experimental.pallas import tpu as pltpu


# Raised scoped-VMEM limit: above the 16/32 MiB defaults, below v7x's 64 MiB physical.
_VMEM_LIMIT_BYTES = 48 * 1024 * 1024
# Working-set target for one N-tile; leaves headroom under the limit on every gen.
_TILE_BUDGET_BYTES = 36 * 1024 * 1024


def _round_up(x, m):
    return ((x + m - 1) // m) * m


def _choose_tile_n(n, t, e, h, requested):
    """Largest multiple-of-8 N-tile whose pipelined working set fits the VMEM budget."""
    # Per-utterance (per tile row) bytes: x tile (bf16, double-buffered) +
    # gx gate buffer (f32) + out (f32, double-buffered) + per-step temporaries.
    per_row = 2 * (t * e * 2) + t * 6 * h * 4 + 2 * (2 * h * 4) + 32 * h * 4
    # Resident weights/biases (assume double-buffered by the pipeline).
    weights = 2 * (e * 6 * h * 2 + 2 * h * 6 * h * 4 + 8 * h * 4)
    budget = max(_TILE_BUDGET_BYTES - weights, 8 * per_row)
    cap = max(8, (budget // per_row) // 8 * 8)
    tile = min(int(requested), cap, _round_up(n, 8))
    return max(8, (tile // 8) * 8)


# -----------------------------------------------------------------------------
# Pallas kernel: fused bidirectional GRU, final hidden states of both directions
# concatenated along the feature axis -> (TILE_N, 2H).
# -----------------------------------------------------------------------------
def _bigru_last_kernel(x_ref, wih_ref, whh_ref, bgx_ref, bhn_ref, out_ref):
    # x_ref  : (T, TILE_N, E)  bf16, time-major
    # wih_ref: (E, 6H)         bf16  columns = [r_f z_f n_f | r_b z_b n_b]
    # whh_ref: (2H, 6H)        f32   block-diagonal (fwd rows -> fwd cols, bwd -> bwd)
    # bgx_ref: (1, 6H)         f32   b_ih (+ b_hh folded in for the r/z gates)
    # bhn_ref: (1, 2H)         f32   b_hh of the n gate  [n_f | n_b]
    # out_ref: (TILE_N, 2H)    f32   [h_fwd_final | h_bwd_final]
    T, TN, E = x_ref.shape
    H = whh_ref.shape[0] // 2
    H3 = 3 * H

    # ---- input projection for both directions / all timesteps: one bf16 MXU matmul.
    x2 = x_ref[...].reshape(T * TN, E)             # merge leading dims (TN % 8 == 0): cheap
    gx = jnp.dot(x2, wih_ref[...], preferred_element_type=jnp.float32)
    gx = gx + bgx_ref[...]                         # (T*TN, 6H) f32; rows [t*TN:(t+1)*TN] = timestep t

    whh = whh_ref[...]                             # (2H, 6H) f32
    bhn_f = bhn_ref[:, :H]
    bhn_b = bhn_ref[:, H:]

    h = jnp.zeros((TN, 2 * H), jnp.float32)        # [h_fwd | h_bwd], kept in f32

    # ---- fused fwd/bwd recurrence; T is static -> fully unrolled for LLO scheduling.
    for t in range(T):
        gh = jnp.dot(h, whh, preferred_element_type=jnp.float32)        # (TN, 6H)
        gxf = gx[t * TN:(t + 1) * TN]              # forward gates use timestep t        (static, sublane-aligned)
        tb = T - 1 - t
        gxb = gx[tb * TN:(tb + 1) * TN]            # backward gates use timestep T-1-t

        # Per-direction pre-activations: x-proj(+bias) + hidden-proj, one wide add each.
        af = gxf[:, :H3] + gh[:, :H3]              # (TN, 3H)  fwd [r z n]
        ab = gxb[:, H3:] + gh[:, H3:]              # (TN, 3H)  bwd [r z n]

        rf = jax.nn.sigmoid(af[:, 0 * H:1 * H])
        zf = jax.nn.sigmoid(af[:, 1 * H:2 * H])
        nf = jnp.tanh(gxf[:, 2 * H:3 * H] + rf * (gh[:, 2 * H:3 * H] + bhn_f))

        rb = jax.nn.sigmoid(ab[:, 0 * H:1 * H])
        zb = jax.nn.sigmoid(ab[:, 1 * H:2 * H])
        nb = jnp.tanh(gxb[:, 5 * H:6 * H] + rb * (gh[:, 5 * H:6 * H] + bhn_b))

        hf = (1.0 - zf) * nf + zf * h[:, :H]
        hb = (1.0 - zb) * nb + zb * h[:, H:]
        h = jnp.concatenate([hf, hb], axis=-1)

    out_ref[...] = h                               # single unmasked full-width store


def bigru_last(x_tm, wih_fused, whh_fused, bias_gx, bhh_n, *, tile_n=128):
    """x_tm: (T, N, E) bf16 time-major -> (N, 2H) f32 final bidirectional hidden states."""
    T, N, E = x_tm.shape
    H2, G = whh_fused.shape                        # 2H, 6H
    H = H2 // 2

    tile_n = _choose_tile_n(N, T, E, H, tile_n)
    n_pad = _round_up(N, tile_n)
    if n_pad != N:
        x_tm = jnp.pad(x_tm, ((0, 0), (0, n_pad - N), (0, 0)))

    out = pl.pallas_call(
        _bigru_last_kernel,
        out_shape=jax.ShapeDtypeStruct((n_pad, H2), jnp.float32),
        grid_spec=pltpu.PrefetchScalarGridSpec(
            num_scalar_prefetch=0,
            grid=(n_pad // tile_n,),
            in_specs=[
                pl.BlockSpec((T, tile_n, E), lambda i: (0, i, 0)),   # x tile: pipelined DMA
                pl.BlockSpec((E, G), lambda i: (0, 0)),              # weights: resident
                pl.BlockSpec((H2, G), lambda i: (0, 0)),
                pl.BlockSpec((1, G), lambda i: (0, 0)),
                pl.BlockSpec((1, H2), lambda i: (0, 0)),
            ],
            out_specs=pl.BlockSpec((tile_n, H2), lambda i: (i, 0)),
        ),
        compiler_params=pltpu.CompilerParams(
            dimension_semantics=("parallel",),     # lets v7x shard N-tiles across its 2 cores
            vmem_limit_bytes=_VMEM_LIMIT_BYTES,
        ),
    )(x_tm, wih_fused, whh_fused, bias_gx, bhh_n)
    return out[:N]


# -----------------------------------------------------------------------------
# RnnUttEncoder wrapper (use_attn=False, feat_size=0, init_state=None)
# -----------------------------------------------------------------------------
def init_params(key, vocab_size, embed_dim, utt_cell_size):
    """Torch-like GRU params (transposed): W_ih (E,3H), W_hh (H,3H), gate order [r, z, n]."""
    H, E = utt_cell_size, embed_dim
    k = 1.0 / np.sqrt(H)
    keys = jax.random.split(key, 9)
    u = lambda kk, shape: jax.random.uniform(kk, shape, jnp.float32, -k, k)
    return {
        'embedding': jax.random.normal(keys[0], (vocab_size, E), jnp.float32),
        'wih_f': u(keys[1], (E, 3 * H)), 'whh_f': u(keys[2], (H, 3 * H)),
        'bih_f': u(keys[3], (1, 3 * H)), 'bhh_f': u(keys[4], (1, 3 * H)),
        'wih_b': u(keys[5], (E, 3 * H)), 'whh_b': u(keys[6], (H, 3 * H)),
        'bih_b': u(keys[7], (1, 3 * H)), 'bhh_b': u(keys[8], (1, 3 * H)),
    }


def _fuse_gru_params(params):
    """Build the fused/bf16 kernel-side weights from torch-like per-direction params."""
    H = params['whh_f'].shape[0]
    z = jnp.zeros((H, 3 * H), jnp.float32)
    wih_fused = jnp.concatenate([params['wih_f'], params['wih_b']],
                                axis=1).astype(jnp.bfloat16)                   # (E, 6H)
    whh_fused = jnp.concatenate(
        [jnp.concatenate([params['whh_f'], z], axis=1),
         jnp.concatenate([z, params['whh_b']], axis=1)], axis=0)               # (2H, 6H) block-diag

    # Fold b_hh of the r/z gates into the precomputed input-projection bias.
    def fold(bih, bhh):
        return jnp.concatenate([bih[:, :2 * H] + bhh[:, :2 * H], bih[:, 2 * H:]], axis=1)

    bias_gx = jnp.concatenate([fold(params['bih_f'], params['bhh_f']),
                               fold(params['bih_b'], params['bhh_b'])], axis=1)  # (1, 6H)
    bhh_n = jnp.concatenate([params['bhh_f'][:, 2 * H:],
                             params['bhh_b'][:, 2 * H:]], axis=1)                # (1, 2H)
    return wih_fused, whh_fused, bias_gx, bhh_n


def rnn_utt_encoder_forward(params, utterances, *, tile_n=128):
    """utterances: int32 (batch, max_ctx_lens, max_utt_len) -> (batch, max_ctx_lens, 2H)."""
    B, C, T = utterances.shape
    H = params['whh_f'].shape[0]
    flat_words = utterances.reshape(B * C, T)                         # (N, T)
    # Embedding gather directly into time-major bf16 layout (T, N, E).
    emb = params['embedding'].astype(jnp.bfloat16)
    x_tm = jnp.take(emb, flat_words.T, axis=0)                        # (T, N, E) bf16
    wih_fused, whh_fused, bias_gx, bhh_n = _fuse_gru_params(params)
    utt = bigru_last(x_tm, wih_fused, whh_fused, bias_gx, bhh_n, tile_n=tile_n)
    return utt.reshape(B, C, 2 * H)
    # TODO(synk): use_attn=True branch (key_w/query softmax pooling) and feats/init_state
    # inputs are not needed for the default config and not implemented here.


# -----------------------------------------------------------------------------
# Pure-JAX reference with identical mixed precision (bf16 x / W_ih operands,
# f32 accumulation, f32 hidden state) for the correctness check.
# -----------------------------------------------------------------------------
def ref_forward(params, utterances):
    B, C, T = utterances.shape
    flat = utterances.reshape(-1, T)
    x = jnp.take(params['embedding'].astype(jnp.bfloat16), flat, axis=0)   # (N, T, E) bf16
    N = x.shape[0]
    H = params['whh_f'].shape[0]

    def run(wih, whh, bih, bhh, reverse):
        wih = wih.astype(jnp.bfloat16)
        h = jnp.zeros((N, H), jnp.float32)
        ts = range(T - 1, -1, -1) if reverse else range(T)
        for t in ts:
            gx = jnp.dot(x[:, t, :], wih, preferred_element_type=jnp.float32) + bih
            gh = jnp.dot(h, whh, preferred_element_type=jnp.float32) + bhh
            r = jax.nn.sigmoid(gx[:, :H] + gh[:, :H])
            zg = jax.nn.sigmoid(gx[:, H:2 * H] + gh[:, H:2 * H])
            n = jnp.tanh(gx[:, 2 * H:] + r * gh[:, 2 * H:])
            h = (1.0 - zg) * n + zg * h
        return h

    h_f = run(params['wih_f'], params['whh_f'], params['bih_f'], params['bhh_f'], False)
    h_b = run(params['wih_b'], params['whh_b'], params['bih_b'], params['bhh_b'], True)
    return jnp.concatenate([h_f, h_b], axis=-1).reshape(B, C, 2 * H)


if __name__ == "__main__":
    # Small, module-consistent shapes; H chosen so 2H / 6H are lane (128) aligned.
    batch, max_ctx_lens, max_utt_len = 2, 8, 8
    vocab_size, embed_dim, utt_cell_size = 64, 128, 64

    key = jax.random.PRNGKey(0)
    pkey, dkey = jax.random.split(key)
    params = init_params(pkey, vocab_size, embed_dim, utt_cell_size)

    utterances = jax.random.randint(
        dkey, (batch, max_ctx_lens, max_utt_len), 0, vocab_size, dtype=jnp.int32)

    # tile_n=8 so the demo's N = 16 utterances exercise the pipelined grid (2 tiles).
    out = rnn_utt_encoder_forward(params, utterances, tile_n=8)
    out = jax.block_until_ready(out)

    ref = jax.block_until_ready(ref_forward(params, utterances))
    assert out.shape == (batch, max_ctx_lens, 2 * utt_cell_size)
    np.testing.assert_allclose(np.asarray(out), np.asarray(ref), rtol=2e-3, atol=2e-3)

    print("KERNEL_OK")
</pallas_src>

<mosaic_0001>
module attributes {stable_mosaic.version = 11 : i64} {
  func.func @_bigru_last_kernel(%arg0: i32, %arg1: memref<8x8x128xbf16, #tpu.memory_space<vmem>>, %arg2: memref<128x384xbf16, #tpu.memory_space<vmem>>, %arg3: memref<128x384xf32, #tpu.memory_space<vmem>>, %arg4: memref<1x384xf32, #tpu.memory_space<vmem>>, %arg5: memref<1x128xf32, #tpu.memory_space<vmem>>, %arg6: memref<8x128xf32, #tpu.memory_space<vmem>>) attributes {dimension_semantics = [#tpu.dimension_semantics<parallel>], iteration_bounds = array<i64: 2>, scalar_prefetch = 0 : i64, scratch_operands = 0 : i64, tpu.core_type = #tpu.core_type<tc>, window_params = [{transform_indices = @transform_0, window_bounds = array<i64: 8, 8, 128>}, {pipeline_mode = #tpu.pipeline_mode<synchronous>, transform_indices = @transform_1, window_bounds = array<i64: 128, 384>}, {pipeline_mode = #tpu.pipeline_mode<synchronous>, transform_indices = @transform_2, window_bounds = array<i64: 128, 384>}, {pipeline_mode = #tpu.pipeline_mode<synchronous>, transform_indices = @transform_3, window_bounds = array<i64: 1, 384>}, {pipeline_mode = #tpu.pipeline_mode<synchronous>, transform_indices = @transform_4, window_bounds = array<i64: 1, 128>}, {transform_indices = @transform_5, window_bounds = array<i64: 8, 128>}]} {
    %c0 = arith.constant 0 : index
    %c0_0 = arith.constant 0 : index
    %c0_1 = arith.constant 0 : index
    %0 = vector.load %arg1[%c0, %c0_0, %c0_1] : memref<8x8x128xbf16, #tpu.memory_space<vmem>>, vector<8x8x128xbf16>
    %1 = vector.shape_cast %0 : vector<8x8x128xbf16> to vector<64x128xbf16>
    %c0_2 = arith.constant 0 : index
    %c0_3 = arith.constant 0 : index
    %2 = vector.load %arg2[%c0_2, %c0_3] : memref<128x384xbf16, #tpu.memory_space<vmem>>, vector<128x384xbf16>
    %cst = arith.constant dense<0.000000e+00> : vector<64x384xf32>
    %3 = tpu.matmul %1, %2, %cst {dimension_numbers = #tpu.dot_dimension_numbers<[1], [0], [0], [1], [0, 0, 1, 1], [], []>} : vector<64x128xbf16>, vector<128x384xbf16>, vector<64x384xf32> -> vector<64x384xf32>
    %c0_4 = arith.constant 0 : index
    %c0_5 = arith.constant 0 : index
    %4 = vector.load %arg4[%c0_4, %c0_5] : memref<1x384xf32, #tpu.memory_space<vmem>>, vector<1x384xf32>
    %5 = vector.broadcast %4 : vector<1x384xf32> to vector<64x384xf32>
    %6 = arith.addf %3, %5 : vector<64x384xf32>
    %c0_6 = arith.constant 0 : index
    %c0_7 = arith.constant 0 : index
    %7 = vector.load %arg3[%c0_6, %c0_7] : memref<128x384xf32, #tpu.memory_space<vmem>>, vector<128x384xf32>
    %c0_8 = arith.constant 0 : index
    %c0_9 = arith.constant 0 : index
    %8 = vector.load %arg5[%c0_8, %c0_9] : memref<1x128xf32, #tpu.memory_space<vmem>>, vector<1x64xf32>
    %c0_10 = arith.constant 0 : index
    %c64 = arith.constant 64 : index
    %9 = vector.load %arg5[%c0_10, %c64] : memref<1x128xf32, #tpu.memory_space<vmem>>, vector<1x64xf32>
    %cst_11 = arith.constant 0.000000e+00 : f32
    %10 = vector.broadcast %cst_11 : f32 to vector<8x128xf32>
    %cst_12 = arith.constant dense<0.000000e+00> : vector<8x384xf32>
    %11 = tpu.matmul %10, %7, %cst_12 {dimension_numbers = #tpu.dot_dimension_numbers<[1], [0], [0], [1], [0, 0, 1, 1], [], []>} : vector<8x128xf32>, vector<128x384xf32>, vector<8x384xf32> -> vector<8x384xf32>
    %12 = vector.extract_strided_slice %6 {offsets = [0, 0], sizes = [8, 384], strides = [1, 1]} : vector<64x384xf32> to vector<8x384xf32>
    %13 = vector.extract_strided_slice %6 {offsets = [56, 0], sizes = [8, 384], strides = [1, 1]} : vector<64x384xf32> to vector<8x384xf32>
    %14 = vector.extract_strided_slice %12 {offsets = [0, 0], sizes = [8, 192], strides = [1, 1]} : vector<8x384xf32> to vector<8x192xf32>
    %15 = vector.extract_strided_slice %11 {offsets = [0, 0], sizes = [8, 192], strides = [1, 1]} : vector<8x384xf32> to vector<8x192xf32>
    %16 = arith.addf %14, %15 : vector<8x192xf32>
    %17 = vector.extract_strided_slice %13 {offsets = [0, 192], sizes = [8, 192], strides = [1, 1]} : vector<8x384xf32> to vector<8x192xf32>
    %18 = vector.extract_strided_slice %11 {offsets = [0, 192], sizes = [8, 192], strides = [1, 1]} : vector<8x384xf32> to vector<8x192xf32>
    %19 = arith.addf %17, %18 : vector<8x192xf32>
    %20 = vector.extract_strided_slice %16 {offsets = [0, 0], sizes = [8, 64], strides = [1, 1]} : vector<8x192xf32> to vector<8x64xf32>
    %21 = arith.negf %20 : vector<8x64xf32>
    %22 = math.exp %21 : vector<8x64xf32>
    %cst_13 = arith.constant 1.000000e+00 : f32
    %23 = vector.broadcast %cst_13 : f32 to vector<8x64xf32>
    %24 = arith.addf %23, %22 : vector<8x64xf32>
    %25 = arith.divf %23, %24 : vector<8x64xf32>
    %26 = vector.extract_strided_slice %16 {offsets = [0, 64], sizes = [8, 64], strides = [1, 1]} : vector<8x192xf32> to vector<8x64xf32>
    %27 = arith.negf %26 : vector<8x64xf32>
    %28 = math.exp %27 : vector<8x64xf32>
    %cst_14 = arith.constant 1.000000e+00 : f32
    %29 = vector.broadcast %cst_14 : f32 to vector<8x64xf32>
    %30 = arith.addf %29, %28 : vector<8x64xf32>
    %31 = arith.divf %29, %30 : vector<8x64xf32>
    %32 = vector.extract_strided_slice %12 {offsets = [0, 128], sizes = [8, 64], strides = [1, 1]} : vector<8x384xf32> to vector<8x64xf32>
    %33 = vector.extract_strided_slice %11 {offsets = [0, 128], sizes = [8, 64], strides = [1, 1]} : vector<8x384xf32> to vector<8x64xf32>
    %34 = vector.broadcast %8 : vector<1x64xf32> to vector<8x64xf32>
    %35 = arith.addf %33, %34 : vector<8x64xf32>
    %36 = arith.mulf %25, %35 : vector<8x64xf32>
    %37 = arith.addf %32, %36 : vector<8x64xf32>
    %38 = math.tanh %37 : vector<8x64xf32>
    %39 = vector.extract_strided_slice %19 {offsets = [0, 0], sizes = [8, 64], strides = [1, 1]} : vector<8x192xf32> to vector<8x64xf32>
    %40 = arith.negf %39 : vector<8x64xf32>
    %41 = math.exp %40 : vector<8x64xf32>
    %cst_15 = arith.constant 1.000000e+00 : f32
    %42 = vector.broadcast %cst_15 : f32 to vector<8x64xf32>
    %43 = arith.addf %42, %41 : vector<8x64xf32>
    %44 = arith.divf %42, %43 : vector<8x64xf32>
    %45 = vector.extract_strided_slice %19 {offsets = [0, 64], sizes = [8, 64], strides = [1, 1]} : vector<8x192xf32> to vector<8x64xf32>
    %46 = arith.negf %45 : vector<8x64xf32>
    %47 = math.exp %46 : vector<8x64xf32>
    %cst_16 = arith.constant 1.000000e+00 : f32
    %48 = vector.broadcast %cst_16 : f32 to vector<8x64xf32>
    %49 = arith.addf %48, %47 : vector<8x64xf32>
    %50 = arith.divf %48, %49 : vector<8x64xf32>
    %51 = vector.extract_strided_slice %13 {offsets = [0, 320], sizes = [8, 64], strides = [1, 1]} : vector<8x384xf32> to vector<8x64xf32>
    %52 = vector.extract_strided_slice %11 {offsets = [0, 320], sizes = [8, 64], strides = [1, 1]} : vector<8x384xf32> to vector<8x64xf32>
    %53 = vector.broadcast %9 : vector<1x64xf32> to vector<8x64xf32>
    %54 = arith.addf %52, %53 : vector<8x64xf32>
    %55 = arith.mulf %44, %54 : vector<8x64xf32>
    %56 = arith.addf %51, %55 : vector<8x64xf32>
    %57 = math.tanh %56 : vector<8x64xf32>
    %cst_17 = arith.constant 1.000000e+00 : f32
    %58 = vector.broadcast %cst_17 : f32 to vector<8x64xf32>
    %59 = arith.subf %58, %31 : vector<8x64xf32>
    %60 = arith.mulf %59, %38 : vector<8x64xf32>
    %61 = vector.extract_strided_slice %10 {offsets = [0, 0], sizes = [8, 64], strides = [1, 1]} : vector<8x128xf32> to vector<8x64xf32>
    %62 = arith.mulf %31, %61 : vector<8x64xf32>
    %63 = arith.addf %60, %62 : vector<8x64xf32>
    %cst_18 = arith.constant 1.000000e+00 : f32
    %64 = vector.broadcast %cst_18 : f32 to vector<8x64xf32>
    %65 = arith.subf %64, %50 : vector<8x64xf32>
    %66 = arith.mulf %65, %57 : vector<8x64xf32>
    %67 = vector.extract_strided_slice %10 {offsets = [0, 64], sizes = [8, 64], strides = [1, 1]} : vector<8x128xf32> to vector<8x64xf32>
    %68 = arith.mulf %50, %67 : vector<8x64xf32>
    %69 = arith.addf %66, %68 : vector<8x64xf32>
    %70 = tpu.concatenate %63, %69 in 1 : vector<8x64xf32>, vector<8x64xf32> -> vector<8x128xf32>
    %cst_19 = arith.constant dense<0.000000e+00> : vector<8x384xf32>
    %71 = tpu.matmul %70, %7, %cst_19 {dimension_numbers = #tpu.dot_dimension_numbers<[1], [0], [0], [1], [0, 0, 1, 1], [], []>} : vector<8x128xf32>, vector<128x384xf32>, vector<8x384xf32> -> vector<8x384xf32>
    %72 = vector.extract_strided_slice %6 {offsets = [8, 0], sizes = [8, 384], strides = [1, 1]} : vector<64x384xf32> to vector<8x384xf32>
    %73 = vector.extract_strided_slice %6 {offsets = [48, 0], sizes = [8, 384], strides = [1, 1]} : vector<64x384xf32> to vector<8x384xf32>
    %74 = vector.extract_strided_slice %72 {offsets = [0, 0], sizes = [8, 192], strides = [1, 1]} : vector<8x384xf32> to vector<8x192xf32>
    %75 = vector.extract_strided_slice %71 {offsets = [0, 0], sizes = [8, 192], strides = [1, 1]} : vector<8x384xf32> to vector<8x192xf32>
    %76 = arith.addf %74, %75 : vector<8x192xf32>
    %77 = vector.extract_strided_slice %73 {offsets = [0, 192], sizes = [8, 192], strides = [1, 1]} : vector<8x384xf32> to vector<8x192xf32>
    %78 = vector.extract_strided_slice %71 {offsets = [0, 192], sizes = [8, 192], strides = [1, 1]} : vector<8x384xf32> to vector<8x192xf32>
    %79 = arith.addf %77, %78 : vector<8x192xf32>
    %80 = vector.extract_strided_slice %76 {offsets = [0, 0], sizes = [8, 64], strides = [1, 1]} : vector<8x192xf32> to vector<8x64xf32>
    %81 = arith.negf %80 : vector<8x64xf32>
    %82 = math.exp %81 : vector<8x64xf32>
    %cst_20 = arith.constant 1.000000e+00 : f32
    %83 = vector.broadcast %cst_20 : f32 to vector<8x64xf32>
    %84 = arith.addf %83, %82 : vector<8x64xf32>
    %85 = arith.divf %83, %84 : vector<8x64xf32>
    %86 = vector.extract_strided_slice %76 {offsets = [0, 64], sizes = [8, 64], strides = [1, 1]} : vector<8x192xf32> to vector<8x64xf32>
    %87 = arith.negf %86 : vector<8x64xf32>
    %88 = math.exp %87 : vector<8x64xf32>
    %cst_21 = arith.constant 1.000000e+00 : f32
    %89 = vector.broadcast %cst_21 : f32 to vector<8x64xf32>
    %90 = arith.addf %89, %88 : vector<8x64xf32>
    %91 = arith.divf %89, %90 : vector<8x64xf32>
    %92 = vector.extract_strided_slice %72 {offsets = [0, 128], sizes = [8, 64], strides = [1, 1]} : vector<8x384xf32> to vector<8x64xf32>
    %93 = vector.extract_strided_slice %71 {offsets = [0, 128], sizes = [8, 64], strides = [1, 1]} : vector<8x384xf32> to vector<8x64xf32>
    %94 = vector.broadcast %8 : vector<1x64xf32> to vector<8x64xf32>
    %95 = arith.addf %93, %94 : vector<8x64xf32>
    %96 = arith.mulf %85, %95 : vector<8x64xf32>
    %97 = arith.addf %92, %96 : vector<8x64xf32>
    %98 = math.tanh %97 : vector<8x64xf32>
    %99 = vector.extract_strided_slice %79 {offsets = [0, 0], sizes = [8, 64], strides = [1, 1]} : vector<8x192xf32> to vector<8x64xf32>
    %100 = arith.negf %99 : vector<8x64xf32>
    %101 = math.exp %100 : vector<8x64xf32>
    %cst_22 = arith.constant 1.000000e+00 : f32
    %102 = vector.broadcast %cst_22 : f32 to vector<8x64xf32>
    %103 = arith.addf %102, %101 : vector<8x64xf32>
    %104 = arith.divf %102, %103 : vector<8x64xf32>
    %105 = vector.extract_strided_slice %79 {offsets = [0, 64], sizes = [8, 64], strides = [1, 1]} : vector<8x192xf32> to vector<8x64xf32>
    %106 = arith.negf %105 : vector<8x64xf32>
    %107 = math.exp %106 : vector<8x64xf32>
    %cst_23 = arith.constant 1.000000e+00 : f32
    %108 = vector.broadcast %cst_23 : f32 to vector<8x64xf32>
    %109 = arith.addf %108, %107 : vector<8x64xf32>
    %110 = arith.divf %108, %109 : vector<8x64xf32>
    %111 = vector.extract_strided_slice %73 {offsets = [0, 320], sizes = [8, 64], strides = [1, 1]} : vector<8x384xf32> to vector<8x64xf32>
    %112 = vector.extract_strided_slice %71 {offsets = [0, 320], sizes = [8, 64], strides = [1, 1]} : vector<8x384xf32> to vector<8x64xf32>
    %113 = vector.broadcast %9 : vector<1x64xf32> to vector<8x64xf32>
    %114 = arith.addf %112, %113 : vector<8x64xf32>
    %115 = arith.mulf %104, %114 : vector<8x64xf32>
    %116 = arith.addf %111, %115 : vector<8x64xf32>
    %117 = math.tanh %116 : vector<8x64xf32>
    %cst_24 = arith.constant 1.000000e+00 : f32
    %118 = vector.broadcast %cst_24 : f32 to vector<8x64xf32>
    %119 = arith.subf %118, %91 : vector<8x64xf32>
    %120 = arith.mulf %119, %98 : vector<8x64xf32>
    %121 = vector.extract_strided_slice %70 {offsets = [0, 0], sizes = [8, 64], strides = [1, 1]} : vector<8x128xf32> to vector<8x64xf32>
    %122 = arith.mulf %91, %121 : vector<8x64xf32>
    %123 = arith.addf %120, %122 : vector<8x64xf32>
    %cst_25 = arith.constant 1.000000e+00 : f32
    %124 = vector.broadcast %cst_25 : f32 to vector<8x64xf32>
    %125 = arith.subf %124, %110 : vector<8x64xf32>
    %126 = arith.mulf %125, %117 : vector<8x64xf32>
    %127 = vector.extract_strided_slice %70 {offsets = [0, 64], sizes = [8, 64], strides = [1, 1]} : vector<8x128xf32> to vector<8x64xf32>
    %128 = arith.mulf %110, %127 : vector<8x64xf32>
    %129 = arith.addf %126, %128 : vector<8x64xf32>
    %130 = tpu.concatenate %123, %129 in 1 : vector<8x64xf32>, vector<8x64xf32> -> vector<8x128xf32>
    %cst_26 = arith.constant dense<0.000000e+00> : vector<8x384xf32>
    %131 = tpu.matmul %130, %7, %cst_26 {dimension_numbers = #tpu.dot_dimension_numbers<[1], [0], [0], [1], [0, 0, 1, 1], [], []>} : vector<8x128xf32>, vector<128x384xf32>, vector<8x384xf32> -> vector<8x384xf32>
    %132 = vector.extract_strided_slice %6 {offsets = [16, 0], sizes = [8, 384], strides = [1, 1]} : vector<64x384xf32> to vector<8x384xf32>
    %133 = vector.extract_strided_slice %6 {offsets = [40, 0], sizes = [8, 384], strides = [1, 1]} : vector<64x384xf32> to vector<8x384xf32>
    %134 = vector.extract_strided_slice %132 {offsets = [0, 0], sizes = [8, 192], strides = [1, 1]} : vector<8x384xf32> to vector<8x192xf32>
    %135 = vector.extract_strided_slice %131 {offsets = [0, 0], sizes = [8, 192], strides = [1, 1]} : vector<8x384xf32> to vector<8x192xf32>
    %136 = arith.addf %134, %135 : vector<8x192xf32>
    %137 = vector.extract_strided_slice %133 {offsets = [0, 192], sizes = [8, 192], strides = [1, 1]} : vector<8x384xf32> to vector<8x192xf32>
    %138 = vector.extract_strided_slice %131 {offsets = [0, 192], sizes = [8, 192], strides = [1, 1]} : vector<8x384xf32> to vector<8x192xf32>
    %139 = arith.addf %137, %138 : vector<8x192xf32>
    %140 = vector.extract_strided_slice %136 {offsets = [0, 0], sizes = [8, 64], strides = [1, 1]} : vector<8x192xf32> to vector<8x64xf32>
    %141 = arith.negf %140 : vector<8x64xf32>
    %142 = math.exp %141 : vector<8x64xf32>
    %cst_27 = arith.constant 1.000000e+00 : f32
    %143 = vector.broadcast %cst_27 : f32 to vector<8x64xf32>
    %144 = arith.addf %143, %142 : vector<8x64xf32>
    %145 = arith.divf %143, %144 : vector<8x64xf32>
    %146 = vector.extract_strided_slice %136 {offsets = [0, 64], sizes = [8, 64], strides = [1, 1]} : vector<8x192xf32> to vector<8x64xf32>
    %147 = arith.negf %146 : vector<8x64xf32>
    %148 = math.exp %147 : vector<8x64xf32>
    %cst_28 = arith.constant 1.000000e+00 : f32
    %149 = vector.broadcast %cst_28 : f32 to vector<8x64xf32>
    %150 = arith.addf %149, %148 : vector<8x64xf32>
    %151 = arith.divf %149, %150 : vector<8x64xf32>
    %152 = vector.extract_strided_slice %132 {offsets = [0, 128], sizes = [8, 64], strides = [1, 1]} : vector<8x384xf32> to vector<8x64xf32>
    %153 = vector.extract_strided_slice %131 {offsets = [0, 128], sizes = [8, 64], strides = [1, 1]} : vector<8x384xf32> to vector<8x64xf32>
    %154 = vector.broadcast %8 : vector<1x64xf32> to vector<8x64xf32>
    %155 = arith.addf %153, %154 : vector<8x64xf32>
    %156 = arith.mulf %145, %155 : vector<8x64xf32>
    %157 = arith.addf %152, %156 : vector<8x64xf32>
    %158 = math.tanh %157 : vector<8x64xf32>
    %159 = vector.extract_strided_slice %139 {offsets = [0, 0], sizes = [8, 64], strides = [1, 1]} : vector<8x192xf32> to vector<8x64xf32>
    %160 = arith.negf %159 : vector<8x64xf32>
    %161 = math.exp %160 : vector<8x64xf32>
    %cst_29 = arith.constant 1.000000e+00 : f32
    %162 = vector.broadcast %cst_29 : f32 to vector<8x64xf32>
    %163 = arith.addf %162, %161 : vector<8x64xf32>
    %164 = arith.divf %162, %163 : vector<8x64xf32>
    %165 = vector.extract_strided_slice %139 {offsets = [0, 64], sizes = [8, 64], strides = [1, 1]} : vector<8x192xf32> to vector<8x64xf32>
    %166 = arith.negf %165 : vector<8x64xf32>
    %167 = math.exp %166 : vector<8x64xf32>
    %cst_30 = arith.constant 1.000000e+00 : f32
    %168 = vector.broadcast %cst_30 : f32 to vector<8x64xf32>
    %169 = arith.addf %168, %167 : vector<8x64xf32>
    %170 = arith.divf %168, %169 : vector<8x64xf32>
    %171 = vector.extract_strided_slice %133 {offsets = [0, 320], sizes = [8, 64], strides = [1, 1]} : vector<8x384xf32> to vector<8x64xf32>
    %172 = vector.extract_strided_slice %131 {offsets = [0, 320], sizes = [8, 64], strides = [1, 1]} : vector<8x384xf32> to vector<8x64xf32>
    %173 = vector.broadcast %9 : vector<1x64xf32> to vector<8x64xf32>
    %174 = arith.addf %172, %173 : vector<8x64xf32>
    %175 = arith.mulf %164, %174 : vector<8x64xf32>
    %176 = arith.addf %171, %175 : vector<8x64xf32>
    %177 = math.tanh %176 : vector<8x64xf32>
    %cst_31 = arith.constant 1.000000e+00 : f32
    %178 = vector.broadcast %cst_31 : f32 to vector<8x64xf32>
    %179 = arith.subf %178, %151 : vector<8x64xf32>
    %180 = arith.mulf %179, %158 : vector<8x64xf32>
    %181 = vector.extract_strided_slice %130 {offsets = [0, 0], sizes = [8, 64], strides = [1, 1]} : vector<8x128xf32> to vector<8x64xf32>
    %182 = arith.mulf %151, %181 : vector<8x64xf32>
    %183 = arith.addf %180, %182 : vector<8x64xf32>
    %cst_32 = arith.constant 1.000000e+00 : f32
    %184 = vector.broadcast %cst_32 : f32 to vector<8x64xf32>
    %185 = arith.subf %184, %170 : vector<8x64xf32>
    %186 = arith.mulf %185, %177 : vector<8x64xf32>
    %187 = vector.extract_strided_slice %130 {offsets = [0, 64], sizes = [8, 64], strides = [1, 1]} : vector<8x128xf32> to vector<8x64xf32>
    %188 = arith.mulf %170, %187 : vector<8x64xf32>
    %189 = arith.addf %186, %188 : vector<8x64xf32>
    %190 = tpu.concatenate %183, %189 in 1 : vector<8x64xf32>, vector<8x64xf32> -> vector<8x128xf32>
    %cst_33 = arith.constant dense<0.000000e+00> : vector<8x384xf32>
    %191 = tpu.matmul %190, %7, %cst_33 {dimension_numbers = #tpu.dot_dimension_numbers<[1], [0], [0], [1], [0, 0, 1, 1], [], []>} : vector<8x128xf32>, vector<128x384xf32>, vector<8x384xf32> -> vector<8x384xf32>
    %192 = vector.extract_strided_slice %6 {offsets = [24, 0], sizes = [8, 384], strides = [1, 1]} : vector<64x384xf32> to vector<8x384xf32>
    %193 = vector.extract_strided_slice %6 {offsets = [32, 0], sizes = [8, 384], strides = [1, 1]} : vector<64x384xf32> to vector<8x384xf32>
    %194 = vector.extract_strided_slice %192 {offsets = [0, 0], sizes = [8, 192], strides = [1, 1]} : vector<8x384xf32> to vector<8x192xf32>
    %195 = vector.extract_strided_slice %191 {offsets = [0, 0], sizes = [8, 192], strides = [1, 1]} : vector<8x384xf32> to vector<8x192xf32>
    %196 = arith.addf %194, %195 : vector<8x192xf32>
    %197 = vector.extract_strided_slice %193 {offsets = [0, 192], sizes = [8, 192], strides = [1, 1]} : vector<8x384xf32> to vector<8x192xf32>
    %198 = vector.extract_strided_slice %191 {offsets = [0, 192], sizes = [8, 192], strides = [1, 1]} : vector<8x384xf32> to vector<8x192xf32>
    %199 = arith.addf %197, %198 : vector<8x192xf32>
    %200 = vector.extract_strided_slice %196 {offsets = [0, 0], sizes = [8, 64], strides = [1, 1]} : vector<8x192xf32> to vector<8x64xf32>
    %201 = arith.negf %200 : vector<8x64xf32>
    %202 = math.exp %201 : vector<8x64xf32>
    %cst_34 = arith.constant 1.000000e+00 : f32
    %203 = vector.broadcast %cst_34 : f32 to vector<8x64xf32>
    %204 = arith.addf %203, %202 : vector<8x64xf32>
    %205 = arith.divf %203, %204 : vector<8x64xf32>
    %206 = vector.extract_strided_slice %196 {offsets = [0, 64], sizes = [8, 64], strides = [1, 1]} : vector<8x192xf32> to vector<8x64xf32>
    %207 = arith.negf %206 : vector<8x64xf32>
    %208 = math.exp %207 : vector<8x64xf32>
    %cst_35 = arith.constant 1.000000e+00 : f32
    %209 = vector.broadcast %cst_35 : f32 to vector<8x64xf32>
    %210 = arith.addf %209, %208 : vector<8x64xf32>
    %211 = arith.divf %209, %210 : vector<8x64xf32>
    %212 = vector.extract_strided_slice %192 {offsets = [0, 128], sizes = [8, 64], strides = [1, 1]} : vector<8x384xf32> to vector<8x64xf32>
    %213 = vector.extract_strided_slice %191 {offsets = [0, 128], sizes = [8, 64], strides = [1, 1]} : vector<8x384xf32> to vector<8x64xf32>
    %214 = vector.broadcast %8 : vector<1x64xf32> to vector<8x64xf32>
    %215 = arith.addf %213, %214 : vector<8x64xf32>
    %216 = arith.mulf %205, %215 : vector<8x64xf32>
    %217 = arith.addf %212, %216 : vector<8x64xf32>
    %218 = math.tanh %217 : vector<8x64xf32>
    %219 = vector.extract_strided_slice %199 {offsets = [0, 0], sizes = [8, 64], strides = [1, 1]} : vector<8x192xf32> to vector<8x64xf32>
    %220 = arith.negf %219 : vector<8x64xf32>
    %221 = math.exp %220 : vector<8x64xf32>
    %cst_36 = arith.constant 1.000000e+00 : f32
    %222 = vector.broadcast %cst_36 : f32 to vector<8x64xf32>
    %223 = arith.addf %222, %221 : vector<8x64xf32>
    %224 = arith.divf %222, %223 : vector<8x64xf32>
    %225 = vector.extract_strided_slice %199 {offsets = [0, 64], sizes = [8, 64], strides = [1, 1]} : vector<8x192xf32> to vector<8x64xf32>
    %226 = arith.negf %225 : vector<8x64xf32>
    %227 = math.exp %226 : vector<8x64xf32>
    %cst_37 = arith.constant 1.000000e+00 : f32
    %228 = vector.broadcast %cst_37 : f32 to vector<8x64xf32>
    %229 = arith.addf %228, %227 : vector<8x64xf32>
    %230 = arith.divf %228, %229 : vector<8x64xf32>
    %231 = vector.extract_strided_slice %193 {offsets = [0, 320], sizes = [8, 64], strides = [1, 1]} : vector<8x384xf32> to vector<8x64xf32>
    %232 = vector.extract_strided_slice %191 {offsets = [0, 320], sizes = [8, 64], strides = [1, 1]} : vector<8x384xf32> to vector<8x64xf32>
    %233 = vector.broadcast %9 : vector<1x64xf32> to vector<8x64xf32>
    %234 = arith.addf %232, %233 : vector<8x64xf32>
    %235 = arith.mulf %224, %234 : vector<8x64xf32>
    %236 = arith.addf %231, %235 : vector<8x64xf32>
    %237 = math.tanh %236 : vector<8x64xf32>
    %cst_38 = arith.constant 1.000000e+00 : f32
    %238 = vector.broadcast %cst_38 : f32 to vector<8x64xf32>
    %239 = arith.subf %238, %211 : vector<8x64xf32>
    %240 = arith.mulf %239, %218 : vector<8x64xf32>
    %241 = vector.extract_strided_slice %190 {offsets = [0, 0], sizes = [8, 64], strides = [1, 1]} : vector<8x128xf32> to vector<8x64xf32>
    %242 = arith.mulf %211, %241 : vector<8x64xf32>
    %243 = arith.addf %240, %242 : vector<8x64xf32>
    %cst_39 = arith.constant 1.000000e+00 : f32
    %244 = vector.broadcast %cst_39 : f32 to vector<8x64xf32>
    %245 = arith.subf %244, %230 : vector<8x64xf32>
    %246 = arith.mulf %245, %237 : vector<8x64xf32>
    %247 = vector.extract_strided_slice %190 {offsets = [0, 64], sizes = [8, 64], strides = [1, 1]} : vector<8x128xf32> to vector<8x64xf32>
    %248 = arith.mulf %230, %247 : vector<8x64xf32>
    %249 = arith.addf %246, %248 : vector<8x64xf32>
    %250 = tpu.concatenate %243, %249 in 1 : vector<8x64xf32>, vector<8x64xf32> -> vector<8x128xf32>
    %cst_40 = arith.constant dense<0.000000e+00> : vector<8x384xf32>
    %251 = tpu.matmul %250, %7, %cst_40 {dimension_numbers = #tpu.dot_dimension_numbers<[1], [0], [0], [1], [0, 0, 1, 1], [], []>} : vector<8x128xf32>, vector<128x384xf32>, vector<8x384xf32> -> vector<8x384xf32>
    %252 = vector.extract_strided_slice %6 {offsets = [32, 0], sizes = [8, 384], strides = [1, 1]} : vector<64x384xf32> to vector<8x384xf32>
    %253 = vector.extract_strided_slice %6 {offsets = [24, 0], sizes = [8, 384], strides = [1, 1]} : vector<64x384xf32> to vector<8x384xf32>
    %254 = vector.extract_strided_slice %252 {offsets = [0, 0], sizes = [8, 192], strides = [1, 1]} : vector<8x384xf32> to vector<8x192xf32>
    %255 = vector.extract_strided_slice %251 {offsets = [0, 0], sizes = [8, 192], strides = [1, 1]} : vector<8x384xf32> to vector<8x192xf32>
    %256 = arith.addf %254, %255 : vector<8x192xf32>
    %257 = vector.extract_strided_slice %253 {offsets = [0, 192], sizes = [8, 192], strides = [1, 1]} : vector<8x384xf32> to vector<8x192xf32>
    %258 = vector.extract_strided_slice %251 {offsets = [0, 192], sizes = [8, 192], strides = [1, 1]} : vector<8x384xf32> to vector<8x192xf32>
    %259 = arith.addf %257, %258 : vector<8x192xf32>
    %260 = vector.extract_strided_slice %256 {offsets = [0, 0], sizes = [8, 64], strides = [1, 1]} : vector<8x192xf32> to vector<8x64xf32>
    %261 = arith.negf %260 : vector<8x64xf32>
    %262 = math.exp %261 : vector<8x64xf32>
    %cst_41 = arith.constant 1.000000e+00 : f32
    %263 = vector.broadcast %cst_41 : f32 to vector<8x64xf32>
    %264 = arith.addf %263, %262 : vector<8x64xf32>
    %265 = arith.divf %263, %264 : vector<8x64xf32>
    %266 = vector.extract_strided_slice %256 {offsets = [0, 64], sizes = [8, 64], strides = [1, 1]} : vector<8x192xf32> to vector<8x64xf32>
    %267 = arith.negf %266 : vector<8x64xf32>
    %268 = math.exp %267 : vector<8x64xf32>
    %cst_42 = arith.constant 1.000000e+00 : f32
    %269 = vector.broadcast %cst_42 : f32 to vector<8x64xf32>
    %270 = arith.addf %269, %268 : vector<8x64xf32>
    %271 = arith.divf %269, %270 : vector<8x64xf32>
    %272 = vector.extract_strided_slice %252 {offsets = [0, 128], sizes = [8, 64], strides = [1, 1]} : vector<8x384xf32> to vector<8x64xf32>
    %273 = vector.extract_strided_slice %251 {offsets = [0, 128], sizes = [8, 64], strides = [1, 1]} : vector<8x384xf32> to vector<8x64xf32>
    %274 = vector.broadcast %8 : vector<1x64xf32> to vector<8x64xf32>
    %275 = arith.addf %273, %274 : vector<8x64xf32>
    %276 = arith.mulf %265, %275 : vector<8x64xf32>
    %277 = arith.addf %272, %276 : vector<8x64xf32>
    %278 = math.tanh %277 : vector<8x64xf32>
    %279 = vector.extract_strided_slice %259 {offsets = [0, 0], sizes = [8, 64], strides = [1, 1]} : vector<8x192xf32> to vector<8x64xf32>
    %280 = arith.negf %279 : vector<8x64xf32>
    %281 = math.exp %280 : vector<8x64xf32>
    %cst_43 = arith.constant 1.000000e+00 : f32
    %282 = vector.broadcast %cst_43 : f32 to vector<8x64xf32>
    %283 = arith.addf %282, %281 : vector<8x64xf32>
    %284 = arith.divf %282, %283 : vector<8x64xf32>
    %285 = vector.extract_strided_slice %259 {offsets = [0, 64], sizes = [8, 64], strides = [1, 1]} : vector<8x192xf32> to vector<8x64xf32>
    %286 = arith.negf %285 : vector<8x64xf32>
    %287 = math.exp %286 : vector<8x64xf32>
    %cst_44 = arith.constant 1.000000e+00 : f32
    %288 = vector.broadcast %cst_44 : f32 to vector<8x64xf32>
    %289 = arith.addf %288, %287 : vector<8x64xf32>
    %290 = arith.divf %288, %289 : vector<8x64xf32>
    %291 = vector.extract_strided_slice %253 {offsets = [0, 320], sizes = [8, 64], strides = [1, 1]} : vector<8x384xf32> to vector<8x64xf32>
    %292 = vector.extract_strided_slice %251 {offsets = [0, 320], sizes = [8, 64], strides = [1, 1]} : vector<8x384xf32> to vector<8x64xf32>
    %293 = vector.broadcast %9 : vector<1x64xf32> to vector<8x64xf32>
    %294 = arith.addf %292, %293 : vector<8x64xf32>
    %295 = arith.mulf %284, %294 : vector<8x64xf32>
    %296 = arith.addf %291, %295 : vector<8x64xf32>
    %297 = math.tanh %296 : vector<8x64xf32>
    %cst_45 = arith.constant 1.000000e+00 : f32
    %298 = vector.broadcast %cst_45 : f32 to vector<8x64xf32>
    %299 = arith.subf %298, %271 : vector<8x64xf32>
    %300 = arith.mulf %299, %278 : vector<8x64xf32>
    %301 = vector.extract_strided_slice %250 {offsets = [0, 0], sizes = [8, 64], strides = [1, 1]} : vector<8x128xf32> to vector<8x64xf32>
    %302 = arith.mulf %271, %301 : vector<8x64xf32>
    %303 = arith.addf %300, %302 : vector<8x64xf32>
    %cst_46 = arith.constant 1.000000e+00 : f32
    %304 = vector.broadcast %cst_46 : f32 to vector<8x64xf32>
    %305 = arith.subf %304, %290 : vector<8x64xf32>
    %306 = arith.mulf %305, %297 : vector<8x64xf32>
    %307 = vector.extract_strided_slice %250 {offsets = [0, 64], sizes = [8, 64], strides = [1, 1]} : vector<8x128xf32> to vector<8x64xf32>
    %308 = arith.mulf %290, %307 : vector<8x64xf32>
    %309 = arith.addf %306, %308 : vector<8x64xf32>
    %310 = tpu.concatenate %303, %309 in 1 : vector<8x64xf32>, vector<8x64xf32> -> vector<8x128xf32>
    %cst_47 = arith.constant dense<0.000000e+00> : vector<8x384xf32>
    %311 = tpu.matmul %310, %7, %cst_47 {dimension_numbers = #tpu.dot_dimension_numbers<[1], [0], [0], [1], [0, 0, 1, 1], [], []>} : vector<8x128xf32>, vector<128x384xf32>, vector<8x384xf32> -> vector<8x384xf32>
    %312 = vector.extract_strided_slice %6 {offsets = [40, 0], sizes = [8, 384], strides = [1, 1]} : vector<64x384xf32> to vector<8x384xf32>
    %313 = vector.extract_strided_slice %6 {offsets = [16, 0], sizes = [8, 384], strides = [1, 1]} : vector<64x384xf32> to vector<8x384xf32>
    %314 = vector.extract_strided_slice %312 {offsets = [0, 0], sizes = [8, 192], strides = [1, 1]} : vector<8x384xf32> to vector<8x192xf32>
    %315 = vector.extract_strided_slice %311 {offsets = [0, 0], sizes = [8, 192], strides = [1, 1]} : vector<8x384xf32> to vector<8x192xf32>
    %316 = arith.addf %314, %315 : vector<8x192xf32>
    %317 = vector.extract_strided_slice %313 {offsets = [0, 192], sizes = [8, 192], strides = [1, 1]} : vector<8x384xf32> to vector<8x192xf32>
    %318 = vector.extract_strided_slice %311 {offsets = [0, 192], sizes = [8, 192], strides = [1, 1]} : vector<8x384xf32> to vector<8x192xf32>
    %319 = arith.addf %317, %318 : vector<8x192xf32>
    %320 = vector.extract_strided_slice %316 {offsets = [0, 0], sizes = [8, 64], strides = [1, 1]} : vector<8x192xf32> to vector<8x64xf32>
    %321 = arith.negf %320 : vector<8x64xf32>
    %322 = math.exp %321 : vector<8x64xf32>
    %cst_48 = arith.constant 1.000000e+00 : f32
    %323 = vector.broadcast %cst_48 : f32 to vector<8x64xf32>
    %324 = arith.addf %323, %322 : vector<8x64xf32>
    %325 = arith.divf %323, %324 : vector<8x64xf32>
    %326 = vector.extract_strided_slice %316 {offsets = [0, 64], sizes = [8, 64], strides = [1, 1]} : vector<8x192xf32> to vector<8x64xf32>
    %327 = arith.negf %326 : vector<8x64xf32>
    %328 = math.exp %327 : vector<8x64xf32>
    %cst_49 = arith.constant 1.000000e+00 : f32
    %329 = vector.broadcast %cst_49 : f32 to vector<8x64xf32>
    %330 = arith.addf %329, %328 : vector<8x64xf32>
    %331 = arith.divf %329, %330 : vector<8x64xf32>
    %332 = vector.extract_strided_slice %312 {offsets = [0, 128], sizes = [8, 64], strides = [1, 1]} : vector<8x384xf32> to vector<8x64xf32>
    %333 = vector.extract_strided_slice %311 {offsets = [0, 128], sizes = [8, 64], strides = [1, 1]} : vector<8x384xf32> to vector<8x64xf32>
    %334 = vector.broadcast %8 : vector<1x64xf32> to vector<8x64xf32>
    %335 = arith.addf %333, %334 : vector<8x64xf32>
    %336 = arith.mulf %325, %335 : vector<8x64xf32>
    %337 = arith.addf %332, %336 : vector<8x64xf32>
    %338 = math.tanh %337 : vector<8x64xf32>
    %339 = vector.extract_strided_slice %319 {offsets = [0, 0], sizes = [8, 64], strides = [1, 1]} : vector<8x192xf32> to vector<8x64xf32>
    %340 = arith.negf %339 : vector<8x64xf32>
    %341 = math.exp %340 : vector<8x64xf32>
    %cst_50 = arith.constant 1.000000e+00 : f32
    %342 = vector.broadcast %cst_50 : f32 to vector<8x64xf32>
    %343 = arith.addf %342, %341 : vector<8x64xf32>
    %344 = arith.divf %342, %343 : vector<8x64xf32>
    %345 = vector.extract_strided_slice %319 {offsets = [0, 64], sizes = [8, 64], strides = [1, 1]} : vector<8x192xf32> to vector<8x64xf32>
    %346 = arith.negf %345 : vector<8x64xf32>
    %347 = math.exp %346 : vector<8x64xf32>
    %cst_51 = arith.constant 1.000000e+00 : f32
    %348 = vector.broadcast %cst_51 : f32 to vector<8x64xf32>
    %349 = arith.addf %348, %347 : vector<8x64xf32>
    %350 = arith.divf %348, %349 : vector<8x64xf32>
    %351 = vector.extract_strided_slice %313 {offsets = [0, 320], sizes = [8, 64], strides = [1, 1]} : vector<8x384xf32> to vector<8x64xf32>
    %352 = vector.extract_strided_slice %311 {offsets = [0, 320], sizes = [8, 64], strides = [1, 1]} : vector<8x384xf32> to vector<8x64xf32>
    %353 = vector.broadcast %9 : vector<1x64xf32> to vector<8x64xf32>
    %354 = arith.addf %352, %353 : vector<8x64xf32>
    %355 = arith.mulf %344, %354 : vector<8x64xf32>
    %356 = arith.addf %351, %355 : vector<8x64xf32>
    %357 = math.tanh %356 : vector<8x64xf32>
    %cst_52 = arith.constant 1.000000e+00 : f32
    %358 = vector.broadcast %cst_52 : f32 to vector<8x64xf32>
    %359 = arith.subf %358, %331 : vector<8x64xf32>
    %360 = arith.mulf %359, %338 : vector<8x64xf32>
    %361 = vector.extract_strided_slice %310 {offsets = [0, 0], sizes = [8, 64], strides = [1, 1]} : vector<8x128xf32> to vector<8x64xf32>
    %362 = arith.mulf %331, %361 : vector<8x64xf32>
    %363 = arith.addf %360, %362 : vector<8x64xf32>
    %cst_53 = arith.constant 1.000000e+00 : f32
    %364 = vector.broadcast %cst_53 : f32 to vector<8x64xf32>
    %365 = arith.subf %364, %350 : vector<8x64xf32>
    %366 = arith.mulf %365, %357 : vector<8x64xf32>
    %367 = vector.extract_strided_slice %310 {offsets = [0, 64], sizes = [8, 64], strides = [1, 1]} : vector<8x128xf32> to vector<8x64xf32>
    %368 = arith.mulf %350, %367 : vector<8x64xf32>
    %369 = arith.addf %366, %368 : vector<8x64xf32>
    %370 = tpu.concatenate %363, %369 in 1 : vector<8x64xf32>, vector<8x64xf32> -> vector<8x128xf32>
    %cst_54 = arith.constant dense<0.000000e+00> : vector<8x384xf32>
    %371 = tpu.matmul %370, %7, %cst_54 {dimension_numbers = #tpu.dot_dimension_numbers<[1], [0], [0], [1], [0, 0, 1, 1], [], []>} : vector<8x128xf32>, vector<128x384xf32>, vector<8x384xf32> -> vector<8x384xf32>
    %372 = vector.extract_strided_slice %6 {offsets = [48, 0], sizes = [8, 384], strides = [1, 1]} : vector<64x384xf32> to vector<8x384xf32>
    %373 = vector.extract_strided_slice %6 {offsets = [8, 0], sizes = [8, 384], strides = [1, 1]} : vector<64x384xf32> to vector<8x384xf32>
    %374 = vector.extract_strided_slice %372 {offsets = [0, 0], sizes = [8, 192], strides = [1, 1]} : vector<8x384xf32> to vector<8x192xf32>
    %375 = vector.extract_strided_slice %371 {offsets = [0, 0], sizes = [8, 192], strides = [1, 1]} : vector<8x384xf32> to vector<8x192xf32>
    %376 = arith.addf %374, %375 : vector<8x192xf32>
    %377 = vector.extract_strided_slice %373 {offsets = [0, 192], sizes = [8, 192], strides = [1, 1]} : vector<8x384xf32> to vector<8x192xf32>
    %378 = vector.extract_strided_slice %371 {offsets = [0, 192], sizes = [8, 192], strides = [1, 1]} : vector<8x384xf32> to vector<8x192xf32>
    %379 = arith.addf %377, %378 : vector<8x192xf32>
    %380 = vector.extract_strided_slice %376 {offsets = [0, 0], sizes = [8, 64], strides = [1, 1]} : vector<8x192xf32> to vector<8x64xf32>
    %381 = arith.negf %380 : vector<8x64xf32>
    %382 = math.exp %381 : vector<8x64xf32>
    %cst_55 = arith.constant 1.000000e+00 : f32
    %383 = vector.broadcast %cst_55 : f32 to vector<8x64xf32>
    %384 = arith.addf %383, %382 : vector<8x64xf32>
    %385 = arith.divf %383, %384 : vector<8x64xf32>
    %386 = vector.extract_strided_slice %376 {offsets = [0, 64], sizes = [8, 64], strides = [1, 1]} : vector<8x192xf32> to vector<8x64xf32>
    %387 = arith.negf %386 : vector<8x64xf32>
    %388 = math.exp %387 : vector<8x64xf32>
    %cst_56 = arith.constant 1.000000e+00 : f32
    %389 = vector.broadcast %cst_56 : f32 to vector<8x64xf32>
    %390 = arith.addf %389, %388 : vector<8x64xf32>
    %391 = arith.divf %389, %390 : vector<8x64xf32>
    %392 = vector.extract_strided_slice %372 {offsets = [0, 128], sizes = [8, 64], strides = [1, 1]} : vector<8x384xf32> to vector<8x64xf32>
    %393 = vector.extract_strided_slice %371 {offsets = [0, 128], sizes = [8, 64], strides = [1, 1]} : vector<8x384xf32> to vector<8x64xf32>
    %394 = vector.broadcast %8 : vector<1x64xf32> to vector<8x64xf32>
    %395 = arith.addf %393, %394 : vector<8x64xf32>
    %396 = arith.mulf %385, %395 : vector<8x64xf32>
    %397 = arith.addf %392, %396 : vector<8x64xf32>
    %398 = math.tanh %397 : vector<8x64xf32>
    %399 = vector.extract_strided_slice %379 {offsets = [0, 0], sizes = [8, 64], strides = [1, 1]} : vector<8x192xf32> to vector<8x64xf32>
    %400 = arith.negf %399 : vector<8x64xf32>
    %401 = math.exp %400 : vector<8x64xf32>
    %cst_57 = arith.constant 1.000000e+00 : f32
    %402 = vector.broadcast %cst_57 : f32 to vector<8x64xf32>
    %403 = arith.addf %402, %401 : vector<8x64xf32>
    %404 = arith.divf %402, %403 : vector<8x64xf32>
    %405 = vector.extract_strided_slice %379 {offsets = [0, 64], sizes = [8, 64], strides = [1, 1]} : vector<8x192xf32> to vector<8x64xf32>
    %406 = arith.negf %405 : vector<8x64xf32>
    %407 = math.exp %406 : vector<8x64xf32>
    %cst_58 = arith.constant 1.000000e+00 : f32
    %408 = vector.broadcast %cst_58 : f32 to vector<8x64xf32>
    %409 = arith.addf %408, %407 : vector<8x64xf32>
    %410 = arith.divf %408, %409 : vector<8x64xf32>
    %411 = vector.extract_strided_slice %373 {offsets = [0, 320], sizes = [8, 64], strides = [1, 1]} : vector<8x384xf32> to vector<8x64xf32>
    %412 = vector.extract_strided_slice %371 {offsets = [0, 320], sizes = [8, 64], strides = [1, 1]} : vector<8x384xf32> to vector<8x64xf32>
    %413 = vector.broadcast %9 : vector<1x64xf32> to vector<8x64xf32>
    %414 = arith.addf %412, %413 : vector<8x64xf32>
    %415 = arith.mulf %404, %414 : vector<8x64xf32>
    %416 = arith.addf %411, %415 : vector<8x64xf32>
    %417 = math.tanh %416 : vector<8x64xf32>
    %cst_59 = arith.constant 1.000000e+00 : f32
    %418 = vector.broadcast %cst_59 : f32 to vector<8x64xf32>
    %419 = arith.subf %418, %391 : vector<8x64xf32>
    %420 = arith.mulf %419, %398 : vector<8x64xf32>
    %421 = vector.extract_strided_slice %370 {offsets = [0, 0], sizes = [8, 64], strides = [1, 1]} : vector<8x128xf32> to vector<8x64xf32>
    %422 = arith.mulf %391, %421 : vector<8x64xf32>
    %423 = arith.addf %420, %422 : vector<8x64xf32>
    %cst_60 = arith.constant 1.000000e+00 : f32
    %424 = vector.broadcast %cst_60 : f32 to vector<8x64xf32>
    %425 = arith.subf %424, %410 : vector<8x64xf32>
    %426 = arith.mulf %425, %417 : vector<8x64xf32>
    %427 = vector.extract_strided_slice %370 {offsets = [0, 64], sizes = [8, 64], strides = [1, 1]} : vector<8x128xf32> to vector<8x64xf32>
    %428 = arith.mulf %410, %427 : vector<8x64xf32>
    %429 = arith.addf %426, %428 : vector<8x64xf32>
    %430 = tpu.concatenate %423, %429 in 1 : vector<8x64xf32>, vector<8x64xf32> -> vector<8x128xf32>
    %cst_61 = arith.constant dense<0.000000e+00> : vector<8x384xf32>
    %431 = tpu.matmul %430, %7, %cst_61 {dimension_numbers = #tpu.dot_dimension_numbers<[1], [0], [0], [1], [0, 0, 1, 1], [], []>} : vector<8x128xf32>, vector<128x384xf32>, vector<8x384xf32> -> vector<8x384xf32>
    %432 = vector.extract_strided_slice %6 {offsets = [56, 0], sizes = [8, 384], strides = [1, 1]} : vector<64x384xf32> to vector<8x384xf32>
    %433 = vector.extract_strided_slice %6 {offsets = [0, 0], sizes = [8, 384], strides = [1, 1]} : vector<64x384xf32> to vector<8x384xf32>
    %434 = vector.extract_strided_slice %432 {offsets = [0, 0], sizes = [8, 192], strides = [1, 1]} : vector<8x384xf32> to vector<8x192xf32>
    %435 = vector.extract_strided_slice %431 {offsets = [0, 0], sizes = [8, 192], strides = [1, 1]} : vector<8x384xf32> to vector<8x192xf32>
    %436 = arith.addf %434, %435 : vector<8x192xf32>
    %437 = vector.extract_strided_slice %433 {offsets = [0, 192], sizes = [8, 192], strides = [1, 1]} : vector<8x384xf32> to vector<8x192xf32>
    %438 = vector.extract_strided_slice %431 {offsets = [0, 192], sizes = [8, 192], strides = [1, 1]} : vector<8x384xf32> to vector<8x192xf32>
    %439 = arith.addf %437, %438 : vector<8x192xf32>
    %440 = vector.extract_strided_slice %436 {offsets = [0, 0], sizes = [8, 64], strides = [1, 1]} : vector<8x192xf32> to vector<8x64xf32>
    %441 = arith.negf %440 : vector<8x64xf32>
    %442 = math.exp %441 : vector<8x64xf32>
    %cst_62 = arith.constant 1.000000e+00 : f32
    %443 = vector.broadcast %cst_62 : f32 to vector<8x64xf32>
    %444 = arith.addf %443, %442 : vector<8x64xf32>
    %445 = arith.divf %443, %444 : vector<8x64xf32>
    %446 = vector.extract_strided_slice %436 {offsets = [0, 64], sizes = [8, 64], strides = [1, 1]} : vector<8x192xf32> to vector<8x64xf32>
    %447 = arith.negf %446 : vector<8x64xf32>
    %448 = math.exp %447 : vector<8x64xf32>
    %cst_63 = arith.constant 1.000000e+00 : f32
    %449 = vector.broadcast %cst_63 : f32 to vector<8x64xf32>
    %450 = arith.addf %449, %448 : vector<8x64xf32>
    %451 = arith.divf %449, %450 : vector<8x64xf32>
    %452 = vector.extract_strided_slice %432 {offsets = [0, 128], sizes = [8, 64], strides = [1, 1]} : vector<8x384xf32> to vector<8x64xf32>
    %453 = vector.extract_strided_slice %431 {offsets = [0, 128], sizes = [8, 64], strides = [1, 1]} : vector<8x384xf32> to vector<8x64xf32>
    %454 = vector.broadcast %8 : vector<1x64xf32> to vector<8x64xf32>
    %455 = arith.addf %453, %454 : vector<8x64xf32>
    %456 = arith.mulf %445, %455 : vector<8x64xf32>
    %457 = arith.addf %452, %456 : vector<8x64xf32>
    %458 = math.tanh %457 : vector<8x64xf32>
    %459 = vector.extract_strided_slice %439 {offsets = [0, 0], sizes = [8, 64], strides = [1, 1]} : vector<8x192xf32> to vector<8x64xf32>
    %460 = arith.negf %459 : vector<8x64xf32>
    %461 = math.exp %460 : vector<8x64xf32>
    %cst_64 = arith.constant 1.000000e+00 : f32
    %462 = vector.broadcast %cst_64 : f32 to vector<8x64xf32>
    %463 = arith.addf %462, %461 : vector<8x64xf32>
    %464 = arith.divf %462, %463 : vector<8x64xf32>
    %465 = vector.extract_strided_slice %439 {offsets = [0, 64], sizes = [8, 64], strides = [1, 1]} : vector<8x192xf32> to vector<8x64xf32>
    %466 = arith.negf %465 : vector<8x64xf32>
    %467 = math.exp %466 : vector<8x64xf32>
    %cst_65 = arith.constant 1.000000e+00 : f32
    %468 = vector.broadcast %cst_65 : f32 to vector<8x64xf32>
    %469 = arith.addf %468, %467 : vector<8x64xf32>
    %470 = arith.divf %468, %469 : vector<8x64xf32>
    %471 = vector.extract_strided_slice %433 {offsets = [0, 320], sizes = [8, 64], strides = [1, 1]} : vector<8x384xf32> to vector<8x64xf32>
    %472 = vector.extract_strided_slice %431 {offsets = [0, 320], sizes = [8, 64], strides = [1, 1]} : vector<8x384xf32> to vector<8x64xf32>
    %473 = vector.broadcast %9 : vector<1x64xf32> to vector<8x64xf32>
    %474 = arith.addf %472, %473 : vector<8x64xf32>
    %475 = arith.mulf %464, %474 : vector<8x64xf32>
    %476 = arith.addf %471, %475 : vector<8x64xf32>
    %477 = math.tanh %476 : vector<8x64xf32>
    %cst_66 = arith.constant 1.000000e+00 : f32
    %478 = vector.broadcast %cst_66 : f32 to vector<8x64xf32>
    %479 = arith.subf %478, %451 : vector<8x64xf32>
    %480 = arith.mulf %479, %458 : vector<8x64xf32>
    %481 = vector.extract_strided_slice %430 {offsets = [0, 0], sizes = [8, 64], strides = [1, 1]} : vector<8x128xf32> to vector<8x64xf32>
    %482 = arith.mulf %451, %481 : vector<8x64xf32>
    %483 = arith.addf %480, %482 : vector<8x64xf32>
    %cst_67 = arith.constant 1.000000e+00 : f32
    %484 = vector.broadcast %cst_67 : f32 to vector<8x64xf32>
    %485 = arith.subf %484, %470 : vector<8x64xf32>
    %486 = arith.mulf %485, %477 : vector<8x64xf32>
    %487 = vector.extract_strided_slice %430 {offsets = [0, 64], sizes = [8, 64], strides = [1, 1]} : vector<8x128xf32> to vector<8x64xf32>
    %488 = arith.mulf %470, %487 : vector<8x64xf32>
    %489 = arith.addf %486, %488 : vector<8x64xf32>
    %490 = tpu.concatenate %483, %489 in 1 : vector<8x64xf32>, vector<8x64xf32> -> vector<8x128xf32>
    %c0_68 = arith.constant 0 : index
    %c0_69 = arith.constant 0 : index
    %491 = vector.load %arg6[%c0_68, %c0_69] : memref<8x128xf32, #tpu.memory_space<vmem>>, vector<8x128xf32>
    tpu.vector_store %arg6[%c0_68, %c0_69], %490 {strides = array<i32>} : memref<8x128xf32, #tpu.memory_space<vmem>>, vector<8x128xf32>,
    return
  }
  func.func @transform_0(%arg0: i32) -> (i32, i32, i32) {
    %c0_i32 = arith.constant 0 : i32
    %c0_i32_0 = arith.constant 0 : i32
    %c0_i32_1 = arith.constant 0 : i32
    return %c0_i32, %arg0, %c0_i32_0 : i32, i32, i32
  }
  func.func @transform_1(%arg0: i32) -> (i32, i32) {
    %c0_i32 = arith.constant 0 : i32
    %c0_i32_0 = arith.constant 0 : i32
    %c0_i32_1 = arith.constant 0 : i32
    return %c0_i32, %c0_i32_0 : i32, i32
  }
  func.func @transform_2(%arg0: i32) -> (i32, i32) {
    %c0_i32 = arith.constant 0 : i32
    %c0_i32_0 = arith.constant 0 : i32
    %c0_i32_1 = arith.constant 0 : i32
    return %c0_i32, %c0_i32_0 : i32, i32
  }
  func.func @transform_3(%arg0: i32) -> (i32, i32) {
    %c0_i32 = arith.constant 0 : i32
    %c0_i32_0 = arith.constant 0 : i32
    %c0_i32_1 = arith.constant 0 : i32
    return %c0_i32, %c0_i32_0 : i32, i32
  }
  func.func @transform_4(%arg0: i32) -> (i32, i32) {
    %c0_i32 = arith.constant 0 : i32
    %c0_i32_0 = arith.constant 0 : i32
    %c0_i32_1 = arith.constant 0 : i32
    return %c0_i32, %c0_i32_0 : i32, i32
  }
  func.func @transform_5(%arg0: i32) -> (i32, i32) {
    %c0_i32 = arith.constant 0 : i32
    %c0_i32_0 = arith.constant 0 : i32
    return %arg0, %c0_i32 : i32, i32
  }
}

</mosaic_0001>

<llo_original>
// kernel: tpu_custom_call.1
$region0: #{tpu_custom_call.1}
  #allocation0 [shape = 'u32[]', space=smem, size = 0x4, offset = 0x4, fixed_abs, tag = 'smem constant byte address 0x4 - core index']
  #allocation1 [shape = 'u32[144,128]{1,0:T(1,128)}', space=vmem, size = 0x12000, scoped, tag = 'internal scratch']
  %s0 = inlined_call_operand.hbm [shape: bf16[8,16,128], index: 0, kind: input, shape index: {}]
  %s1 = inlined_call_operand.hbm [shape: bf16[128,384], index: 1, kind: input, shape index: {}]
  %s2 = inlined_call_operand.hbm [shape: f32[128,384], index: 2, kind: input, shape index: {}]
  %s3 = inlined_call_operand.vmem [shape: f32[1,384], index: 3, kind: input, shape index: {}]
  %s4 = inlined_call_operand.vmem [shape: f32[1,128], index: 4, kind: input, shape index: {}]
  %s5 = inlined_call_operand.hbm [shape: f32[16,128], index: 5, kind: output, shape index: {}]
  %s6 = sld [smem:[#allocation0]]
  $region65: #{tpu_custom_call.1} parent=0
    _
  %s8 = ssub.s32 1, %s6
  %s9 = scalar_select 0, %s8, %s6
  $region1: #{tpu_custom_call.1} parent=0
    #allocation2 [shape = 'u8[32768]{0}', space=vmem, size = 0x8000, scoped, tag = 'input window, operand 0']
    #allocation3 [shape = 's32[2]{0}', space=sflag, size = 0x8, scoped, tag = 'scoped memory for tpu_custom_call.1']
    #allocation4 [shape = 's32[2]{0}', space=sflag, size = 0x8, scoped, tag = 'scoped memory for tpu_custom_call.1']
    #allocation5 [shape = 'u8[98304]{0}', space=vmem, size = 0x18000, scoped, tag = 'input window, operand 1, single buffered']
    #allocation6 [shape = 's32[1]{0}', space=sflag, size = 0x4, scoped, tag = 'scoped memory for tpu_custom_call.1']
    #allocation7 [shape = 'u8[196608]{0}', space=vmem, size = 0x30000, scoped, tag = 'input window, operand 2, single buffered']
    #allocation8 [shape = 'u8[8192]{0}', space=vmem, size = 0x2000, scoped, tag = 'output window, operand 0']
    %10 = vsyncpa [#allocation3], 0
    %s11 = scalar_lea.sflag [#allocation3], 1
    %12 = vsyncpa %s11, 0
    %13 = vsyncpa [#allocation6], 0
    %14 = vsyncpa [#allocation4], 0
    %s15 = scalar_lea.sflag [#allocation4], 1
    %16 = vsyncpa %s15, 0
    loop: start=0, step=1, limit=4
    $region2: #{tpu_custom_call.1} parent=1 // loop_pre_header
      _
    $region3: #{tpu_custom_call.1} parent=1 // loop_header
      %s18 = sphi 0, %s22
      %p19 = scmp.ge.s32.totalorder %s18, 4
      %s28 = sphi 0, %s30
      %s31 = sphi 0, %s28
      %s32 = sphi 0, %s31
      %s48 = sphi 0, %s32
      %s52 = sphi 0, %s52
      %s54 = sphi 0, %s52
      %s55 = sphi 0, %s54
      %s69 = sphi 0, %s55
      %s73 = sphi 0, %s73
      %s75 = sphi 0, %s73
      %s76 = sphi 0, %s75
      %s90 = sphi 0, %s76
      %s94 = sphi 0, %s94
      %s96 = sphi 0, %s94
      %s97 = sphi 0, %s96
      %s111 = sphi 0, %s97
      %s115 = sphi 0, %s115
      %s117 = sphi 0, %s115
      %s118 = sphi 0, %s117
      %s132 = sphi 0, %s118
      %s138 = sphi 0, %s140
      %s141 = sphi 0, %s138
      %s142 = sphi 0, %s141
      %s158 = sphi 0, %s142
    $region4: #{tpu_custom_call.1} parent=1 // loop_header_branch
      %21 = sbr.rel (%p19) target = $region8
    $region5: #{tpu_custom_call.1} parent=1 // loop_body
      %s23 = ssub.s32 %s18, 1
      %s24 = ssub.s32 %s18, 2
      %s25 = sadd.s32 %s18, 1
      %s26 = ssub.s32 %s18, %s25
      %p27 = scmp.eq.s32.totalorder %s26, 0
      %s29 = sadd.s32 %s28, 1
      %s30 = scalar_select %p27, %s28, %s29
      %p33 = pneg %p27
      %p34 = scmp.eq.s32.totalorder %s18, 1
      %p35 = por %p33, %p34
      %p36 = scmp.ne.s32.totalorder %s28, %s31
      %p37 = scmp.eq.s32.totalorder %s18, 0
      %p38 = por %p36, %p37
      %p39 = scmp.ne.s32.totalorder %s28, %s31
      %p40 = scmp.eq.s32.totalorder %s23, 1
      %p41 = por %p39, %p40
      %p42 = scmp.ne.s32.totalorder %s31, %s32
      %p43 = scmp.eq.s32.totalorder %s23, 0
      %p44 = por %p42, %p43
      %p45 = scmp.ne.s32.totalorder %s31, %s32
      %p46 = scmp.eq.s32.totalorder %s24, 1
      %p47 = por %p45, %p46
      %p49 = scmp.ne.s32.totalorder %s32, %s48
      %p50 = scmp.eq.s32.totalorder %s24, 0
      %p51 = por %p49, %p50
      %s53 = sadd.s32 %s52, 1
      %p56 = scmp.eq.s32.totalorder %s18, 1
      %p57 = scmp.ne.s32.totalorder %s52, %s54
      %p58 = scmp.eq.s32.totalorder %s18, 0
      %p59 = por %p57, %p58
      %p60 = scmp.ne.s32.totalorder %s52, %s54
      %p61 = scmp.eq.s32.totalorder %s23, 1
      %p62 = por %p60, %p61
      %p63 = scmp.ne.s32.totalorder %s54, %s55
      %p64 = scmp.eq.s32.totalorder %s23, 0
      %p65 = por %p63, %p64
      %p66 = scmp.ne.s32.totalorder %s54, %s55
      %p67 = scmp.eq.s32.totalorder %s24, 1
      %p68 = por %p66, %p67
      %p70 = scmp.ne.s32.totalorder %s55, %s69
      %p71 = scmp.eq.s32.totalorder %s24, 0
      %p72 = por %p70, %p71
      %s74 = sadd.s32 %s73, 1
      %p77 = scmp.eq.s32.totalorder %s18, 1
      %p78 = scmp.ne.s32.totalorder %s73, %s75
      %p79 = scmp.eq.s32.totalorder %s18, 0
      %p80 = por %p78, %p79
      %p81 = scmp.ne.s32.totalorder %s73, %s75
      %p82 = scmp.eq.s32.totalorder %s23, 1
      %p83 = por %p81, %p82
      %p84 = scmp.ne.s32.totalorder %s75, %s76
      %p85 = scmp.eq.s32.totalorder %s23, 0
      %p86 = por %p84, %p85
      %p87 = scmp.ne.s32.totalorder %s75, %s76
      %p88 = scmp.eq.s32.totalorder %s24, 1
      %p89 = por %p87, %p88
      %p91 = scmp.ne.s32.totalorder %s76, %s90
      %p92 = scmp.eq.s32.totalorder %s24, 0
      %p93 = por %p91, %p92
      %s95 = sadd.s32 %s94, 1
      %p98 = scmp.eq.s32.totalorder %s18, 1
      %p99 = scmp.ne.s32.totalorder %s94, %s96
      %p100 = scmp.eq.s32.totalorder %s18, 0
      %p101 = por %p99, %p100
      %p102 = scmp.ne.s32.totalorder %s94, %s96
      %p103 = scmp.eq.s32.totalorder %s23, 1
      %p104 = por %p102, %p103
      %p105 = scmp.ne.s32.totalorder %s96, %s97
      %p106 = scmp.eq.s32.totalorder %s23, 0
      %p107 = por %p105, %p106
      %p108 = scmp.ne.s32.totalorder %s96, %s97
      %p109 = scmp.eq.s32.totalorder %s24, 1
      %p110 = por %p108, %p109
      %p112 = scmp.ne.s32.totalorder %s97, %s111
      %p113 = scmp.eq.s32.totalorder %s24, 0
      %p114 = por %p112, %p113
      %s116 = sadd.s32 %s115, 1
      %p119 = scmp.eq.s32.totalorder %s18, 1
      %p120 = scmp.ne.s32.totalorder %s115, %s117
      %p121 = scmp.eq.s32.totalorder %s18, 0
      %p122 = por %p120, %p121
      %p123 = scmp.ne.s32.totalorder %s115, %s117
      %p124 = scmp.eq.s32.totalorder %s23, 1
      %p125 = por %p123, %p124
      %p126 = scmp.ne.s32.totalorder %s117, %s118
      %p127 = scmp.eq.s32.totalorder %s23, 0
      %p128 = por %p126, %p127
      %p129 = scmp.ne.s32.totalorder %s117, %s118
      %p130 = scmp.eq.s32.totalorder %s24, 1
      %p131 = por %p129, %p130
      %p133 = scmp.ne.s32.totalorder %s118, %s132
      %p134 = scmp.eq.s32.totalorder %s24, 0
      %p135 = por %p133, %p134
      %s136 = ssub.s32 %s18, %s25
      %p137 = scmp.eq.s32.totalorder %s136, 0
      %s139 = sadd.s32 %s138, 1
      %s140 = scalar_select %p137, %s138, %s139
      %p143 = pneg %p137
      %p144 = scmp.eq.s32.totalorder %s18, 1
      %p145 = por %p143, %p144
      %p146 = scmp.ne.s32.totalorder %s138, %s141
      %p147 = scmp.eq.s32.totalorder %s18, 0
      %p148 = por %p146, %p147
      %p149 = scmp.ne.s32.totalorder %s138, %s141
      %p150 = scmp.eq.s32.totalorder %s23, 1
      %p151 = por %p149, %p150
      %p152 = scmp.ne.s32.totalorder %s141, %s142
      %p153 = scmp.eq.s32.totalorder %s23, 0
      %p154 = por %p152, %p153
      %p155 = scmp.ne.s32.totalorder %s141, %s142
      %p156 = scmp.eq.s32.totalorder %s24, 1
      %p157 = por %p155, %p156
      %p159 = scmp.ne.s32.totalorder %s142, %s158
      %p160 = scmp.eq.s32.totalorder %s24, 0
      %p161 = por %p159, %p160
      %p162 = scmp.le.s32.totalorder 1, %s18
      %p163 = scmp.lt.s32.totalorder %s18, 3
      %p164 = pnand %p162, %p163
      %p165 = pneg %p164
      // Predicated region
      $region9: #{tpu_custom_call.1} parent=5 // pred_check
        _
      $region10: #{tpu_custom_call.1} parent=5 // pred_check_branch
        %167 = sbr.rel (%p164) target = $region12
      $region11: #{tpu_custom_call.1} parent=5 // pred_region
        %s168 = ssub.s32 %s18, 1
        // Predicated region
        $region13: #{tpu_custom_call.1} parent=11 // pred_check
          %p169 = pneg %p65
        $region14: #{tpu_custom_call.1} parent=11 // pred_check_branch
          %171 = sbr.rel (%p169) target = $region16
        $region15: #{tpu_custom_call.1} parent=11 // pred_region
          %s173 = ssub.s32 3072, 3072
          %174 = vsyncadd [#allocation6], %s173
          %s175 = sshll.u32 [#allocation5], 4
          %s176 = int_to_ptr.vmem [resolvable:$true] %s175
          %181 = dma.hbm_to_vmem [thread:$0]  %s1, 3072, %s176, [#allocation6], 192, 192, 12
        $region16: #{tpu_custom_call.1} parent=11 // pred_fallthru
          _
        // Predicated region
        $region17: #{tpu_custom_call.1} parent=11 // pred_check
          %p182 = pneg %p86
        $region18: #{tpu_custom_call.1} parent=11 // pred_check_branch
          %184 = sbr.rel (%p182) target = $region20
        $region19: #{tpu_custom_call.1} parent=11 // pred_region
          %s186 = ssub.s32 6144, 6144
          %187 = vsyncadd [#allocation6], %s186
          %s188 = sshll.u32 [#allocation7], 4
          %s189 = int_to_ptr.vmem [resolvable:$true] %s188
          %194 = dma.hbm_to_vmem [thread:$0]  %s2, 6144, %s189, [#allocation6], 384, 384, 24
        $region20: #{tpu_custom_call.1} parent=11 // pred_fallthru
          _
        // Predicated region
        $region21: #{tpu_custom_call.1} parent=11 // pred_check
          %p195 = pneg %p107
        $region22: #{tpu_custom_call.1} parent=11 // pred_check_branch
          %197 = sbr.rel (%p195) target = $region24
        $region23: #{tpu_custom_call.1} parent=11 // pred_region
          _
        $region24: #{tpu_custom_call.1} parent=11 // pred_fallthru
          _
        // Predicated region
        $region25: #{tpu_custom_call.1} parent=11 // pred_check
          %p198 = pneg %p128
        $region26: #{tpu_custom_call.1} parent=11 // pred_check_branch
          %200 = sbr.rel (%p198) target = $region28
        $region27: #{tpu_custom_call.1} parent=11 // pred_region
          _
        $region28: #{tpu_custom_call.1} parent=11 // pred_fallthru
          _
      $region12: #{tpu_custom_call.1} parent=5 // pred_fallthru
        _
      %p201 = scmp.lt.s32.totalorder %s18, 2
      // Predicated region
      $region29: #{tpu_custom_call.1} parent=5 // pred_check
        %p202 = pneg %p201
      $region30: #{tpu_custom_call.1} parent=5 // pred_check_branch
        %204 = sbr.rel (%p202) target = $region32
      $region31: #{tpu_custom_call.1} parent=5 // pred_region
        // Predicated region
        $region33: #{tpu_custom_call.1} parent=31 // pred_check
          %p205 = pneg %p38
        $region34: #{tpu_custom_call.1} parent=31 // pred_check_branch
          %207 = sbr.rel (%p205) target = $region36
        $region35: #{tpu_custom_call.1} parent=31 // pred_region
          %s208 = sand.u32 %s28, 1
          %s209 = scalar_lea.sflag [#allocation3], %s208
          %s210 = sand.u32 %s28, 1
          %s211 = smul.addr %s210, 32
          %s212 = scalar_lea.vmem [#allocation2], %s211
          %s214 = ssub.s32 512, 512
          %215 = vsyncadd %s209, %s214
          %s216 = smul.addr %s18, 64
          %s217 = scalar_lea.hbm %s0, %s216
          %s218 = sshll.u32 %s212, 4
          %s219 = int_to_ptr.vmem [resolvable:$true] %s218
          %224 = dma.hbm_to_vmem [thread:$0]  %s217, 512, %s219, %s209, 128, 64, 4
        $region36: #{tpu_custom_call.1} parent=31 // pred_fallthru
          _
      $region32: #{tpu_custom_call.1} parent=5 // pred_fallthru
        _
      %p225 = scmp.le.s32.totalorder 1, %s18
      %p226 = scmp.lt.s32.totalorder %s18, 3
      %p227 = pnand %p225, %p226
      %p228 = pneg %p227
      // Predicated region
      $region37: #{tpu_custom_call.1} parent=5 // pred_check
        _
      $region38: #{tpu_custom_call.1} parent=5 // pred_check_branch
        %230 = sbr.rel (%p227) target = $region40
      $region39: #{tpu_custom_call.1} parent=5 // pred_region
        %s231 = ssub.s32 %s18, 1
        %s232 = sand.u32 %s31, 1
        %s233 = scalar_lea.sflag [#allocation3], %s232
        %s234 = sand.u32 %s31, 1
        %s235 = smul.addr %s234, 32
        %s236 = scalar_lea.vmem [#allocation2], %s235
        // Predicated region
        $region41: #{tpu_custom_call.1} parent=39 // pred_check
          %p237 = pneg %p44
        $region42: #{tpu_custom_call.1} parent=39 // pred_check_branch
          %239 = sbr.rel (%p237) target = $region44
        $region43: #{tpu_custom_call.1} parent=39 // pred_region
          %240 = dma.done %s233, 512
        $region44: #{tpu_custom_call.1} parent=39 // pred_fallthru
          _
        // Predicated region
        $region45: #{tpu_custom_call.1} parent=39 // pred_check
          %p241 = pneg %p65
        $region46: #{tpu_custom_call.1} parent=39 // pred_check_branch
          %243 = sbr.rel (%p241) target = $region48
        $region47: #{tpu_custom_call.1} parent=39 // pred_region
          %244 = dma.done [#allocation6], 3072
        $region48: #{tpu_custom_call.1} parent=39 // pred_fallthru
          _
        // Predicated region
        $region49: #{tpu_custom_call.1} parent=39 // pred_check
          %p245 = pneg %p86
        $region50: #{tpu_custom_call.1} parent=39 // pred_check_branch
          %247 = sbr.rel (%p245) target = $region52
        $region51: #{tpu_custom_call.1} parent=39 // pred_region
          %248 = dma.done [#allocation6], 6144
        $region52: #{tpu_custom_call.1} parent=39 // pred_fallthru
          _
        %s249 = sand.u32 %s31, 1
        %s250 = scalar_lea.sflag [#allocation3], %s249
        %s251 = sand.u32 %s31, 1
        %s252 = smul.addr %s251, 32
        %s253 = scalar_lea.vmem [#allocation2], %s252
        %p254 = pneg %p44
        %p255 = pneg %p41
        %p256 = pneg %p65
        %p257 = pneg %p62
        %p258 = pneg %p86
        %p259 = pneg %p83
        %p260 = pneg %p107
        %p261 = pneg %p104
        %p262 = pneg %p128
        %p263 = pneg %p125
        %p264 = pneg %p154
        %p265 = pneg %p151
        %s266 = sand.u32 %s141, 1
        %s267 = scalar_lea.sflag [#allocation4], %s266
        %s268 = sand.u32 %s141, 1
        %s269 = smul.addr %s268, 8
        %s270 = scalar_lea.vmem [#allocation8], %s269
        %v272 = vld [vmem:[%s236] sm:$0xf]
        %v273 = vld [vmem:[%s236 + $0x4] sm:$0xf]
        %v274 = vld [vmem:[%s236 + $0x8] sm:$0xf]
        %v275 = vld [vmem:[%s236 + $0xc] sm:$0xf]
        %v276 = vld [vmem:[%s236 + $0x10] sm:$0xf]
        %v277 = vld [vmem:[%s236 + $0x14] sm:$0xf]
        %v278 = vld [vmem:[%s236 + $0x18] sm:$0xf]
        %v279 = vld [vmem:[%s236 + $0x1c] sm:$0xf]
        %v280 = vld [vmem:[#allocation5] sm:$0xff]
        %v281 = vld [vmem:[#allocation5 + $0x8] sm:$0xf]
        %v282 = vld [vmem:[#allocation5 + $0xc] sm:$0xff]
        %v283 = vld [vmem:[#allocation5 + $0x14] sm:$0xf]
        %v284 = vld [vmem:[#allocation5 + $0x18] sm:$0xff]
        %v285 = vld [vmem:[#allocation5 + $0x20] sm:$0xf]
        %v286 = vld [vmem:[#allocation5 + $0x24] sm:$0xff]
        %v287 = vld [vmem:[#allocation5 + $0x2c] sm:$0xf]
        %v288 = vld [vmem:[#allocation5 + $0x30] sm:$0xff]
        %v289 = vld [vmem:[#allocation5 + $0x38] sm:$0xf]
        %v290 = vld [vmem:[#allocation5 + $0x3c] sm:$0xff]
        %v291 = vld [vmem:[#allocation5 + $0x44] sm:$0xf]
        %v292 = vld [vmem:[#allocation5 + $0x48] sm:$0xff]
        %v293 = vld [vmem:[#allocation5 + $0x50] sm:$0xf]
        %v294 = vld [vmem:[#allocation5 + $0x54] sm:$0xff]
        %v295 = vld [vmem:[#allocation5 + $0x5c] sm:$0xf]
        %v296 = vld [vmem:[#allocation5 + $0x60] sm:$0xff]
        %v297 = vld [vmem:[#allocation5 + $0x68] sm:$0xf]
        %v298 = vld [vmem:[#allocation5 + $0x6c] sm:$0xff]
        %v299 = vld [vmem:[#allocation5 + $0x74] sm:$0xf]
        %v300 = vld [vmem:[#allocation5 + $0x78] sm:$0xff]
        %v301 = vld [vmem:[#allocation5 + $0x80] sm:$0xf]
        %v302 = vld [vmem:[#allocation5 + $0x84] sm:$0xff]
        %v303 = vld [vmem:[#allocation5 + $0x8c] sm:$0xf]
        %v304 = vld [vmem:[#allocation5 + $0x90] sm:$0xff]
        %v305 = vld [vmem:[#allocation5 + $0x98] sm:$0xf]
        %v306 = vld [vmem:[#allocation5 + $0x9c] sm:$0xff]
        %v307 = vld [vmem:[#allocation5 + $0xa4] sm:$0xf]
        %v308 = vld [vmem:[#allocation5 + $0xa8] sm:$0xff]
        %v309 = vld [vmem:[#allocation5 + $0xb0] sm:$0xf]
        %v310 = vld [vmem:[#allocation5 + $0xb4] sm:$0xff]
        %v311 = vld [vmem:[#allocation5 + $0xbc] sm:$0xf]
        %v312 = vld [vmem:[%s3] sm:$0x7]
        %v314 = vlaneseq
        %v315 = vshrl.u32 %v314, 7
        %v316 = vsub.s32 0, %v315
        %v317 = vrot.slane %v312, %v316
        %v318 = vlaneseq
        %v319 = vshrl.u32 %v318, 7
        %v320 = vsub.s32 1, %v319
        %v321 = vrot.slane %v312, %v320
        %v322 = vlaneseq
        %v323 = vshrl.u32 %v322, 7
        %v324 = vsub.s32 2, %v323
        %v325 = vrot.slane %v312, %v324
        %v337 = vunpack.c.l.b16 %v272
        %v338 = vunpack.c.l.b16 %v273
        %v339 = vunpack.c.l.b16 %v274
        %v340 = vunpack.c.l.b16 %v275
        %v341 = vunpack.c.l.b16 %v276
        %v342 = vunpack.c.l.b16 %v277
        %v343 = vunpack.c.l.b16 %v278
        %v344 = vunpack.c.l.b16 %v279
        %v345 = vpack.c.b16 %v338, %v337
        %v346 = vpack.c.b16 %v340, %v339
        %v347 = vpack.c.b16 %v342, %v341
        %v348 = vpack.c.b16 %v344, %v343
        %v385 = vunpack.c.l.b16 %v280
        %v386 = vunpack.c.h.b16 %v280
        %v387 = vunpack.c.l.b16 %v281
        %v388 = vunpack.c.l.b16 %v282
        %v389 = vunpack.c.h.b16 %v282
        %v390 = vunpack.c.l.b16 %v283
        %v391 = vunpack.c.l.b16 %v284
        %v392 = vunpack.c.h.b16 %v284
        %v393 = vunpack.c.l.b16 %v285
        %v394 = vunpack.c.l.b16 %v286
        %v395 = vunpack.c.h.b16 %v286
        %v396 = vunpack.c.l.b16 %v287
        %v397 = vunpack.c.l.b16 %v288
        %v398 = vunpack.c.h.b16 %v288
        %v399 = vunpack.c.l.b16 %v289
        %v400 = vunpack.c.l.b16 %v290
        %v401 = vunpack.c.h.b16 %v290
        %v402 = vunpack.c.l.b16 %v291
        %v403 = vunpack.c.l.b16 %v292
        %v404 = vunpack.c.h.b16 %v292
        %v405 = vunpack.c.l.b16 %v293
        %v406 = vunpack.c.l.b16 %v294
        %v407 = vunpack.c.h.b16 %v294
        %v408 = vunpack.c.l.b16 %v295
        %v409 = vunpack.c.l.b16 %v296
        %v410 = vunpack.c.h.b16 %v296
        %v411 = vunpack.c.l.b16 %v297
        %v412 = vunpack.c.l.b16 %v298
        %v413 = vunpack.c.h.b16 %v298
        %v414 = vunpack.c.l.b16 %v299
        %v415 = vunpack.c.l.b16 %v300
        %v416 = vunpack.c.h.b16 %v300
        %v417 = vunpack.c.l.b16 %v301
        %v418 = vunpack.c.l.b16 %v302
        %v419 = vunpack.c.h.b16 %v302
        %v420 = vunpack.c.l.b16 %v303
        %v421 = vunpack.c.l.b16 %v304
        %v422 = vunpack.c.h.b16 %v304
        %v423 = vunpack.c.l.b16 %v305
        %v424 = vunpack.c.l.b16 %v306
        %v425 = vunpack.c.h.b16 %v306
        %v426 = vunpack.c.l.b16 %v307
        %v427 = vunpack.c.l.b16 %v308
        %v428 = vunpack.c.h.b16 %v308
        %v429 = vunpack.c.l.b16 %v309
        %v430 = vunpack.c.l.b16 %v310
        %v431 = vunpack.c.h.b16 %v310
        %v432 = vunpack.c.l.b16 %v311
        %v433 = vpack.c.b16 %v388, %v385
        %v434 = vpack.c.b16 %v389, %v386
        %v435 = vpack.c.b16 %v390, %v387
        %v436 = vpack.c.b16 %v394, %v391
        %v437 = vpack.c.b16 %v395, %v392
        %v438 = vpack.c.b16 %v396, %v393
        %v439 = vpack.c.b16 %v400, %v397
        %v440 = vpack.c.b16 %v401, %v398
        %v441 = vpack.c.b16 %v402, %v399
        %v442 = vpack.c.b16 %v406, %v403
        %v443 = vpack.c.b16 %v407, %v404
        %v444 = vpack.c.b16 %v408, %v405
        %v445 = vpack.c.b16 %v412, %v409
        %v446 = vpack.c.b16 %v413, %v410
        %v447 = vpack.c.b16 %v414, %v411
        %v448 = vpack.c.b16 %v418, %v415
        %v449 = vpack.c.b16 %v419, %v416
        %v450 = vpack.c.b16 %v420, %v417
        %v451 = vpack.c.b16 %v424, %v421
        %v452 = vpack.c.b16 %v425, %v422
        %v453 = vpack.c.b16 %v426, %v423
        %v454 = vpack.c.b16 %v430, %v427
        %v455 = vpack.c.b16 %v431, %v428
        %v456 = vpack.c.b16 %v432, %v429
        %481 = vmatprep.subr.bf16.mxu0 %v434
        %482 = vmatpush1.bf16.msra.mxu0 %v433
        %483 = vmatprep.subr.bf16.mxu0 %v437
        %484 = vmatpush1.bf16.msra.mxu0 %v436
        %485 = vmatprep.subr.bf16.mxu0 %v440
        %486 = vmatpush1.bf16.msra.mxu0 %v439
        %487 = vmatprep.subr.bf16.mxu0 %v443
        %488 = vmatpush1.bf16.msra.mxu0 %v442
        %489 = vmatprep.subr.bf16.mxu0 %v446
        %490 = vmatpush1.bf16.msra.mxu0 %v445
        %491 = vmatprep.subr.bf16.mxu0 %v449
        %492 = vmatpush1.bf16.msra.mxu0 %v448
        %493 = vmatprep.subr.bf16.mxu0 %v452
        %494 = vmatpush1.bf16.msra.mxu0 %v451
        %495 = vmatprep.subr.bf16.mxu0 %v455
        %496 = vmatpush1.bf16.msra.mxu0 %v454
        %497 = vmatprep.subr.bf16.mxu0 0
        %498 = vmatpush1.bf16.msra.mxu0 0
        %499 = vmatprep.subr.bf16.mxu0 0
        %500 = vmatpush1.bf16.msra.mxu0 0
        %501 = vmatprep.subr.bf16.mxu0 0
        %502 = vmatpush1.bf16.msra.mxu0 0
        %503 = vmatprep.subr.bf16.mxu0 0
        %504 = vmatpush1.bf16.msra.mxu0 0
        %505 = vmatprep.subr.bf16.mxu0 0
        %506 = vmatpush1.bf16.msra.mxu0 0
        %507 = vmatprep.subr.bf16.mxu0 0
        %508 = vmatpush1.bf16.msra.mxu0 0
        %509 = vmatprep.subr.bf16.mxu0 0
        %510 = vmatpush1.bf16.msra.mxu0 0
        %511 = vmatprep.subr.bf16.mxu0 0
        %512 = vmatpush1.bf16.msra.mxu0 0
        %513 = vmatprep.mubr.bf16.mxu0 0
        %514 = vmatmul.mubr.bf16.gmra.mrb[0].mxu0 %v345
        %v515 = vpop.f32.mrb[0].mxu0
        %v516 = vadd.f32 %v317, %v515
        %v517 = vpop.f32.mrb[0].mxu0
        %v518 = vadd.f32 %v321, %v517
        %v519 = vpop.f32.mrb[0].mxu0
        %v520 = vadd.f32 %v317, %v519
        %v521 = vpop.f32.mrb[0].mxu0
        %v522 = vadd.f32 %v321, %v521
        %523 = vmatprep.mubr.bf16.mxu0 0
        %524 = vmatmul.mubr.bf16.gmra.mrb[0].mxu0 %v346
        %v525 = vpop.f32.mrb[0].mxu0
        %v526 = vadd.f32 %v317, %v525
        %v527 = vpop.f32.mrb[0].mxu0
        %v528 = vadd.f32 %v321, %v527
        %v529 = vpop.f32.mrb[0].mxu0
        %v530 = vadd.f32 %v317, %v529
        %v531 = vpop.f32.mrb[0].mxu0
        %v532 = vadd.f32 %v321, %v531
        %533 = vmatprep.mubr.bf16.mxu0 0
        %534 = vmatmul.mubr.bf16.gmra.mrb[0].mxu0 %v347
        %v535 = vpop.f32.mrb[0].mxu0
        %v536 = vadd.f32 %v317, %v535
        %v537 = vpop.f32.mrb[0].mxu0
        %v538 = vadd.f32 %v321, %v537
        %v539 = vpop.f32.mrb[0].mxu0
        %v540 = vadd.f32 %v317, %v539
        %v541 = vpop.f32.mrb[0].mxu0
        %v542 = vadd.f32 %v321, %v541
        %543 = vmatprep.mubr.bf16.mxu0 0
        %544 = vmatmul.mubr.bf16.gmra.mrb[0].mxu0 %v348
        %v545 = vpop.f32.mrb[0].mxu0
        %v546 = vadd.f32 %v317, %v545
        %v547 = vpop.f32.mrb[0].mxu0
        %v548 = vadd.f32 %v321, %v547
        %v549 = vpop.f32.mrb[0].mxu0
        %v550 = vadd.f32 %v317, %v549
        %v551 = vpop.f32.mrb[0].mxu0
        %v552 = vadd.f32 %v321, %v551
        %553 = vdwg.mxu0
        %554 = vmatprep.subr.bf16.mxu0 0
        %555 = vmatpush1.bf16.msra.mxu0 %v435
        %556 = vmatprep.subr.bf16.mxu0 0
        %557 = vmatpush1.bf16.msra.mxu0 %v438
        %558 = vmatprep.subr.bf16.mxu0 0
        %559 = vmatpush1.bf16.msra.mxu0 %v441
        %560 = vmatprep.subr.bf16.mxu0 0
        %561 = vmatpush1.bf16.msra.mxu0 %v444
        %562 = vmatprep.subr.bf16.mxu0 0
        %563 = vmatpush1.bf16.msra.mxu0 %v447
        %564 = vmatprep.subr.bf16.mxu0 0
        %565 = vmatpush1.bf16.msra.mxu0 %v450
        %566 = vmatprep.subr.bf16.mxu0 0
        %567 = vmatpush1.bf16.msra.mxu0 %v453
        %568 = vmatprep.subr.bf16.mxu0 0
        %569 = vmatpush1.bf16.msra.mxu0 %v456
        %570 = vmatprep.subr.bf16.mxu0 0
        %571 = vmatpush1.bf16.msra.mxu0 0
        %572 = vmatprep.subr.bf16.mxu0 0
        %573 = vmatpush1.bf16.msra.mxu0 0
        %574 = vmatprep.subr.bf16.mxu0 0
        %575 = vmatpush1.bf16.msra.mxu0 0
        %576 = vmatprep.subr.bf16.mxu0 0
        %577 = vmatpush1.bf16.msra.mxu0 0
        %578 = vmatprep.subr.bf16.mxu0 0
        %579 = vmatpush1.bf16.msra.mxu0 0
        %580 = vmatprep.subr.bf16.mxu0 0
        %581 = vmatpush1.bf16.msra.mxu0 0
        %582 = vmatprep.subr.bf16.mxu0 0
        %583 = vmatpush1.bf16.msra.mxu0 0
        %584 = vmatprep.subr.bf16.mxu0 0
        %585 = vmatpush1.bf16.msra.mxu0 0
        %586 = vmatprep.mubr.bf16.mxu0 0
        %587 = vmatmul.mubr.bf16.gmra.mrb[0].mxu0 %v345
        %v588 = vpop.f32.mrb[0].mxu0
        %v589 = vadd.f32 %v325, %v588
        %v590 = vpop.f32.mrb[0].mxu0
        %v591 = vpop.f32.mrb[0].mxu0
        %v592 = vadd.f32 %v325, %v591
        %v593 = vpop.f32.mrb[0].mxu0
        %594 = vmatprep.mubr.bf16.mxu0 0
        %595 = vmatmul.mubr.bf16.gmra.mrb[0].mxu0 %v346
        %v596 = vpop.f32.mrb[0].mxu0
        %v597 = vadd.f32 %v325, %v596
        %v598 = vpop.f32.mrb[0].mxu0
        %v599 = vpop.f32.mrb[0].mxu0
        %v600 = vadd.f32 %v325, %v599
        %v601 = vpop.f32.mrb[0].mxu0
        %602 = vmatprep.mubr.bf16.mxu0 0
        %603 = vmatmul.mubr.bf16.gmra.mrb[0].mxu0 %v347
        %v604 = vpop.f32.mrb[0].mxu0
        %v605 = vadd.f32 %v325, %v604
        %v606 = vpop.f32.mrb[0].mxu0
        %v607 = vpop.f32.mrb[0].mxu0
        %v608 = vadd.f32 %v325, %v607
        %v609 = vpop.f32.mrb[0].mxu0
        %610 = vmatprep.mubr.bf16.mxu0 0
        %611 = vmatmul.mubr.bf16.gmra.mrb[0].mxu0 %v348
        %v612 = vpop.f32.mrb[0].mxu0
        %v613 = vadd.f32 %v325, %v612
        %v614 = vpop.f32.mrb[0].mxu0
        %v615 = vpop.f32.mrb[0].mxu0
        %v616 = vadd.f32 %v325, %v615
        %v617 = vpop.f32.mrb[0].mxu0
        %618 = vdwg.mxu0
        %v619 = vld [vmem:[#allocation7] sm:$0xff]
        %v620 = vld [vmem:[#allocation7 + $0x8] sm:$0xff]
        %v621 = vld [vmem:[#allocation7 + $0x10] sm:$0xff]
        %v622 = vld [vmem:[#allocation7 + $0x18] sm:$0xff]
        %v623 = vld [vmem:[#allocation7 + $0x20] sm:$0xff]
        %v624 = vld [vmem:[#allocation7 + $0x28] sm:$0xff]
        %v625 = vld [vmem:[#allocation7 + $0x30] sm:$0xff]
        %v626 = vld [vmem:[#allocation7 + $0x38] sm:$0xff]
        %v627 = vld [vmem:[#allocation7 + $0x40] sm:$0xff]
        %v628 = vld [vmem:[#allocation7 + $0x48] sm:$0xff]
        %v629 = vld [vmem:[#allocation7 + $0x50] sm:$0xff]
        %v630 = vld [vmem:[#allocation7 + $0x58] sm:$0xff]
        %v631 = vld [vmem:[#allocation7 + $0x60] sm:$0xff]
        %v632 = vld [vmem:[#allocation7 + $0x68] sm:$0xff]
        %v633 = vld [vmem:[#allocation7 + $0x70] sm:$0xff]
        %v634 = vld [vmem:[#allocation7 + $0x78] sm:$0xff]
        %v635 = vld [vmem:[#allocation7 + $0x80] sm:$0xff]
        %v636 = vld [vmem:[#allocation7 + $0x88] sm:$0xff]
        %v637 = vld [vmem:[#allocation7 + $0x90] sm:$0xff]
        %v638 = vld [vmem:[#allocation7 + $0x98] sm:$0xff]
        %v639 = vld [vmem:[#allocation7 + $0xa0] sm:$0xff]
        %v640 = vld [vmem:[#allocation7 + $0xa8] sm:$0xff]
        %v641 = vld [vmem:[#allocation7 + $0xb0] sm:$0xff]
        %v642 = vld [vmem:[#allocation7 + $0xb8] sm:$0xff]
        %v643 = vld [vmem:[#allocation7 + $0xc0] sm:$0xff]
        %v644 = vld [vmem:[#allocation7 + $0xc8] sm:$0xff]
        %v645 = vld [vmem:[#allocation7 + $0xd0] sm:$0xff]
        %v646 = vld [vmem:[#allocation7 + $0xd8] sm:$0xff]
        %v647 = vld [vmem:[#allocation7 + $0xe0] sm:$0xff]
        %v648 = vld [vmem:[#allocation7 + $0xe8] sm:$0xff]
        %v649 = vld [vmem:[#allocation7 + $0xf0] sm:$0xff]
        %v650 = vld [vmem:[#allocation7 + $0xf8] sm:$0xff]
        %v651 = vld [vmem:[#allocation7 + $0x100] sm:$0xff]
        %v652 = vld [vmem:[#allocation7 + $0x108] sm:$0xff]
        %v653 = vld [vmem:[#allocation7 + $0x110] sm:$0xff]
        %v654 = vld [vmem:[#allocation7 + $0x118] sm:$0xff]
        %v655 = vld [vmem:[#allocation7 + $0x120] sm:$0xff]
        %v656 = vld [vmem:[#allocation7 + $0x128] sm:$0xff]
        %v657 = vld [vmem:[#allocation7 + $0x130] sm:$0xff]
        %v658 = vld [vmem:[#allocation7 + $0x138] sm:$0xff]
        %v659 = vld [vmem:[#allocation7 + $0x140] sm:$0xff]
        %v660 = vld [vmem:[#allocation7 + $0x148] sm:$0xff]
        %v661 = vld [vmem:[#allocation7 + $0x150] sm:$0xff]
        %v662 = vld [vmem:[#allocation7 + $0x158] sm:$0xff]
        %v663 = vld [vmem:[#allocation7 + $0x160] sm:$0xff]
        %v664 = vld [vmem:[#allocation7 + $0x168] sm:$0xff]
        %v665 = vld [vmem:[#allocation7 + $0x170] sm:$0xff]
        %v666 = vld [vmem:[#allocation7 + $0x178] sm:$0xff]
        %v667 = vld [vmem:[%s4] sm:$0x1]
        %668 = vmatprep.subr.mxu0 %v620
        %669 = vmatpush1.msra.mxu0 %v619
        %670 = vmatprep.subr.mxu0 %v623
        %671 = vmatpush1.msra.mxu0 %v622
        %672 = vmatprep.subr.mxu0 %v626
        %673 = vmatpush1.msra.mxu0 %v625
        %674 = vmatprep.subr.mxu0 %v629
        %675 = vmatpush1.msra.mxu0 %v628
        %676 = vmatprep.subr.mxu0 %v632
        %677 = vmatpush1.msra.mxu0 %v631
        %678 = vmatprep.subr.mxu0 %v635
        %679 = vmatpush1.msra.mxu0 %v634
        %680 = vmatprep.subr.mxu0 %v638
        %681 = vmatpush1.msra.mxu0 %v637
        %682 = vmatprep.subr.mxu0 %v641
        %683 = vmatpush1.msra.mxu0 %v640
        %684 = vmatprep.subr.mxu0 %v644
        %685 = vmatpush1.msra.mxu0 %v643
        %686 = vmatprep.subr.mxu0 %v647
        %687 = vmatpush1.msra.mxu0 %v646
        %688 = vmatprep.subr.mxu0 %v650
        %689 = vmatpush1.msra.mxu0 %v649
        %690 = vmatprep.subr.mxu0 %v653
        %691 = vmatpush1.msra.mxu0 %v652
        %692 = vmatprep.subr.mxu0 %v656
        %693 = vmatpush1.msra.mxu0 %v655
        %694 = vmatprep.subr.mxu0 %v659
        %695 = vmatpush1.msra.mxu0 %v658
        %696 = vmatprep.subr.mxu0 %v662
        %697 = vmatpush1.msra.mxu0 %v661
        %698 = vmatprep.subr.mxu0 %v665
        %699 = vmatpush1.msra.mxu0 %v664
        %700 = vmatprep.subr.mxu0 0.0
        %701 = vmatpush1.msra.mxu0 0.0
        %702 = vmatprep.subr.mxu0 0.0
        %703 = vmatpush1.msra.mxu0 0.0
        %704 = vmatprep.subr.mxu0 0.0
        %705 = vmatpush1.msra.mxu0 0.0
        %706 = vmatprep.subr.mxu0 0.0
        %707 = vmatpush1.msra.mxu0 0.0
        %708 = vmatprep.subr.mxu0 0.0
        %709 = vmatpush1.msra.mxu0 0.0
        %710 = vmatprep.subr.mxu0 0.0
        %711 = vmatpush1.msra.mxu0 0.0
        %712 = vmatprep.subr.mxu0 0.0
        %713 = vmatpush1.msra.mxu0 0.0
        %714 = vmatprep.subr.mxu0 0.0
        %715 = vmatpush1.msra.mxu0 0.0
        %716 = vmatprep.subr.mxu0 0.0
        %717 = vmatpush1.msra.mxu0 0.0
        %718 = vmatprep.subr.mxu0 0.0
        %719 = vmatpush1.msra.mxu0 0.0
        %720 = vmatprep.subr.mxu0 0.0
        %721 = vmatpush1.msra.mxu0 0.0
        %722 = vmatprep.subr.mxu0 0.0
        %723 = vmatpush1.msra.mxu0 0.0
        %724 = vmatprep.subr.mxu0 0.0
        %725 = vmatpush1.msra.mxu0 0.0
        %726 = vmatprep.subr.mxu0 0.0
        %727 = vmatpush1.msra.mxu0 0.0
        %728 = vmatprep.subr.mxu0 0.0
        %729 = vmatpush1.msra.mxu0 0.0
        %730 = vmatprep.subr.mxu0 0.0
        %731 = vmatpush1.msra.mxu0 0.0
        %732 = vmatprep.mubr.f32.mxu0 0.0
        %733 = vmatmul.mubr.f32.gmra.mrb[0].mxu0 0.0
        %v734 = vpop.f32.mrb[0].mxu0
        %v735 = vadd.f32 0.0, %v734
        %v736 = vpop.f32.mrb[0].mxu0
        %v737 = vadd.f32 0.0, %v736
        %738 = vdwg.mxu0
        %739 = vmatprep.subr.mxu0 0.0
        %740 = vmatpush1.msra.mxu0 %v621
        %741 = vmatprep.subr.mxu0 0.0
        %742 = vmatpush1.msra.mxu0 %v624
        %743 = vmatprep.subr.mxu0 0.0
        %744 = vmatpush1.msra.mxu0 %v627
        %745 = vmatprep.subr.mxu0 0.0
        %746 = vmatpush1.msra.mxu0 %v630
        %747 = vmatprep.subr.mxu0 0.0
        %748 = vmatpush1.msra.mxu0 %v633
        %749 = vmatprep.subr.mxu0 0.0
        %750 = vmatpush1.msra.mxu0 %v636
        %751 = vmatprep.subr.mxu0 0.0
        %752 = vmatpush1.msra.mxu0 %v639
        %753 = vmatprep.subr.mxu0 0.0
        %754 = vmatpush1.msra.mxu0 %v642
        %755 = vmatprep.subr.mxu0 0.0
        %756 = vmatpush1.msra.mxu0 %v645
        %757 = vmatprep.subr.mxu0 0.0
        %758 = vmatpush1.msra.mxu0 %v648
        %759 = vmatprep.subr.mxu0 0.0
        %760 = vmatpush1.msra.mxu0 %v651
        %761 = vmatprep.subr.mxu0 0.0
        %762 = vmatpush1.msra.mxu0 %v654
        %763 = vmatprep.subr.mxu0 0.0
        %764 = vmatpush1.msra.mxu0 %v657
        %765 = vmatprep.subr.mxu0 0.0
        %766 = vmatpush1.msra.mxu0 %v660
        %767 = vmatprep.subr.mxu0 0.0
        %768 = vmatpush1.msra.mxu0 %v663
        %769 = vmatprep.subr.mxu0 0.0
        %770 = vmatpush1.msra.mxu0 %v666
        %771 = vmatprep.subr.mxu0 0.0
        %772 = vmatpush1.msra.mxu0 0.0
        %773 = vmatprep.subr.mxu0 0.0
        %774 = vmatpush1.msra.mxu0 0.0
        %775 = vmatprep.subr.mxu0 0.0
        %776 = vmatpush1.msra.mxu0 0.0
        %777 = vmatprep.subr.mxu0 0.0
        %778 = vmatpush1.msra.mxu0 0.0
        %779 = vmatprep.subr.mxu0 0.0
        %780 = vmatpush1.msra.mxu0 0.0
        %781 = vmatprep.subr.mxu0 0.0
        %782 = vmatpush1.msra.mxu0 0.0
        %783 = vmatprep.subr.mxu0 0.0
        %784 = vmatpush1.msra.mxu0 0.0
        %785 = vmatprep.subr.mxu0 0.0
        %786 = vmatpush1.msra.mxu0 0.0
        %787 = vmatprep.subr.mxu0 0.0
        %788 = vmatpush1.msra.mxu0 0.0
        %789 = vmatprep.subr.mxu0 0.0
        %790 = vmatpush1.msra.mxu0 0.0
        %791 = vmatprep.subr.mxu0 0.0
        %792 = vmatpush1.msra.mxu0 0.0
        %793 = vmatprep.subr.mxu0 0.0
        %794 = vmatpush1.msra.mxu0 0.0
        %795 = vmatprep.subr.mxu0 0.0
        %796 = vmatpush1.msra.mxu0 0.0
        %797 = vmatprep.subr.mxu0 0.0
        %798 = vmatpush1.msra.mxu0 0.0
        %799 = vmatprep.subr.mxu0 0.0
        %800 = vmatpush1.msra.mxu0 0.0
        %801 = vmatprep.subr.mxu0 0.0
        %802 = vmatpush1.msra.mxu0 0.0
        %803 = vmatprep.mubr.f32.mxu0 0.0
        %804 = vmatmul.mubr.f32.gmra.mrb[0].mxu0 0.0
        %v805 = vpop.f32.mrb[0].mxu0
        %v806 = vadd.f32 0.0, %v805
        %v807 = vpop.f32.mrb[0].mxu0
        %808 = vdwg.mxu0
        %v809 = vadd.f32 %v516, %v735
        %v810 = vadd.f32 %v552, %v737
        %v811 = vadd.f32 %v616, %v806
        %v812 = vxor.u32 %v809, 2147483648
        %v813 = vmul.f32 %v812, 1.442695
        %v814 = vpow.pop %v813
        %v815 = vadd.f32 %v814, 1.0
        %v816 = vrcp.pop %v815
        %v817 = vmul.f32 1.0, %v816
        %v819 = vlaneseq
        %v820 = vshrl.u32 %v819, 7
        %v821 = vsub.s32 0, %v820
        %v822 = vrot.slane %v667, %v821
        %v824 = vadd.f32 %v737, %v822
        %v825 = vmul.f32 %v817, %v824
        %v826 = vadd.f32 %v518, %v825
        %v827 = vtanh.pop %v826
        %v828 = vxor.u32 %v810, 2147483648
        %v829 = vmul.f32 %v828, 1.442695
        %v830 = vpow.pop %v829
        %v831 = vadd.f32 %v830, 1.0
        %v832 = vrcp.pop %v831
        %v833 = vmul.f32 1.0, %v832
        %v834 = vxor.u32 %v811, 2147483648
        %v835 = vmul.f32 %v834, 1.442695
        %v836 = vpow.pop %v835
        %v837 = vadd.f32 %v836, 1.0
        %v838 = vrcp.pop %v837
        %v839 = vmul.f32 1.0, %v838
        %v840 = vadd.f32 %v806, %v822
        %v841 = vmul.f32 %v833, %v840
        %v842 = vadd.f32 %v616, %v841
        %v843 = vtanh.pop %v842
        %v844 = vsub.f32 1.0, %v817
        %846 = vrot.lane.b32.xlu0 %v827, 64
        %v847 = vpop.permute.xlu0 %846
        %v849 = vmul.f32 %v844, %v847
        %v850 = vmul.f32 %v817, 0.0
        %v851 = vadd.f32 %v849, %v850
        %v852 = vsub.f32 1.0, %v839
        %854 = vrot.lane.b32.xlu0 %v843, 64
        %v855 = vpop.permute.xlu0 %854
        %v857 = vmul.f32 %v852, %v855
        %v858 = vmul.f32 %v839, 0.0
        %v859 = vadd.f32 %v857, %v858
        %861 = vrot.lane.b32.xlu0 %v851, 64
        %v862 = vpop.permute.xlu0 %861
        %865 = vrot.lane.b32.xlu0 %v859, 64
        %v866 = vpop.permute.xlu0 %865
        %vm868 = vcmask 523264
        %v869 = vsel %vm868, %v862, %v866
        %870 = vmatprep.subr.mxu0 %v620
        %871 = vmatpush1.msra.mxu0 %v619
        %872 = vmatprep.subr.mxu0 %v623
        %873 = vmatpush1.msra.mxu0 %v622
        %874 = vmatprep.subr.mxu0 %v626
        %875 = vmatpush1.msra.mxu0 %v625
        %876 = vmatprep.subr.mxu0 %v629
        %877 = vmatpush1.msra.mxu0 %v628
        %878 = vmatprep.subr.mxu0 %v632
        %879 = vmatpush1.msra.mxu0 %v631
        %880 = vmatprep.subr.mxu0 %v635
        %881 = vmatpush1.msra.mxu0 %v634
        %882 = vmatprep.subr.mxu0 %v638
        %883 = vmatpush1.msra.mxu0 %v637
        %884 = vmatprep.subr.mxu0 %v641
        %885 = vmatpush1.msra.mxu0 %v640
        %886 = vmatprep.subr.mxu0 %v644
        %887 = vmatpush1.msra.mxu0 %v643
        %888 = vmatprep.subr.mxu0 %v647
        %889 = vmatpush1.msra.mxu0 %v646
        %890 = vmatprep.subr.mxu0 %v650
        %891 = vmatpush1.msra.mxu0 %v649
        %892 = vmatprep.subr.mxu0 %v653
        %893 = vmatpush1.msra.mxu0 %v652
        %894 = vmatprep.subr.mxu0 %v656
        %895 = vmatpush1.msra.mxu0 %v655
        %896 = vmatprep.subr.mxu0 %v659
        %897 = vmatpush1.msra.mxu0 %v658
        %898 = vmatprep.subr.mxu0 %v662
        %899 = vmatpush1.msra.mxu0 %v661
        %900 = vmatprep.subr.mxu0 %v665
        %901 = vmatpush1.msra.mxu0 %v664
        %902 = vmatprep.subr.mxu0 0.0
        %903 = vmatpush1.msra.mxu0 0.0
        %904 = vmatprep.subr.mxu0 0.0
        %905 = vmatpush1.msra.mxu0 0.0
        %906 = vmatprep.subr.mxu0 0.0
        %907 = vmatpush1.msra.mxu0 0.0
        %908 = vmatprep.subr.mxu0 0.0
        %909 = vmatpush1.msra.mxu0 0.0
        %910 = vmatprep.subr.mxu0 0.0
        %911 = vmatpush1.msra.mxu0 0.0
        %912 = vmatprep.subr.mxu0 0.0
        %913 = vmatpush1.msra.mxu0 0.0
        %914 = vmatprep.subr.mxu0 0.0
        %915 = vmatpush1.msra.mxu0 0.0
        %916 = vmatprep.subr.mxu0 0.0
        %917 = vmatpush1.msra.mxu0 0.0
        %918 = vmatprep.subr.mxu0 0.0
        %919 = vmatpush1.msra.mxu0 0.0
        %920 = vmatprep.subr.mxu0 0.0
        %921 = vmatpush1.msra.mxu0 0.0
        %922 = vmatprep.subr.mxu0 0.0
        %923 = vmatpush1.msra.mxu0 0.0
        %924 = vmatprep.subr.mxu0 0.0
        %925 = vmatpush1.msra.mxu0 0.0
        %926 = vmatprep.subr.mxu0 0.0
        %927 = vmatpush1.msra.mxu0 0.0
        %928 = vmatprep.subr.mxu0 0.0
        %929 = vmatpush1.msra.mxu0 0.0
        %930 = vmatprep.subr.mxu0 0.0
        %931 = vmatpush1.msra.mxu0 0.0
        %932 = vmatprep.subr.mxu0 0.0
        %933 = vmatpush1.msra.mxu0 0.0
        %934 = vmatprep.mubr.f32.mxu0 0.0
        %935 = vmatmul.mubr.f32.gmra.mrb[0].mxu0 %v869
        %v936 = vpop.f32.mrb[0].mxu0
        %v937 = vadd.f32 0.0, %v936
        %v938 = vpop.f32.mrb[0].mxu0
        %v939 = vadd.f32 0.0, %v938
        %940 = vdwg.mxu0
        %941 = vmatprep.subr.mxu0 0.0
        %942 = vmatpush1.msra.mxu0 %v621
        %943 = vmatprep.subr.mxu0 0.0
        %944 = vmatpush1.msra.mxu0 %v624
        %945 = vmatprep.subr.mxu0 0.0
        %946 = vmatpush1.msra.mxu0 %v627
        %947 = vmatprep.subr.mxu0 0.0
        %948 = vmatpush1.msra.mxu0 %v630
        %949 = vmatprep.subr.mxu0 0.0
        %950 = vmatpush1.msra.mxu0 %v633
        %951 = vmatprep.subr.mxu0 0.0
        %952 = vmatpush1.msra.mxu0 %v636
        %953 = vmatprep.subr.mxu0 0.0
        %954 = vmatpush1.msra.mxu0 %v639
        %955 = vmatprep.subr.mxu0 0.0
        %956 = vmatpush1.msra.mxu0 %v642
        %957 = vmatprep.subr.mxu0 0.0
        %958 = vmatpush1.msra.mxu0 %v645
        %959 = vmatprep.subr.mxu0 0.0
        %960 = vmatpush1.msra.mxu0 %v648
        %961 = vmatprep.subr.mxu0 0.0
        %962 = vmatpush1.msra.mxu0 %v651
        %963 = vmatprep.subr.mxu0 0.0
        %964 = vmatpush1.msra.mxu0 %v654
        %965 = vmatprep.subr.mxu0 0.0
        %966 = vmatpush1.msra.mxu0 %v657
        %967 = vmatprep.subr.mxu0 0.0
        %968 = vmatpush1.msra.mxu0 %v660
        %969 = vmatprep.subr.mxu0 0.0
        %970 = vmatpush1.msra.mxu0 %v663
        %971 = vmatprep.subr.mxu0 0.0
        %972 = vmatpush1.msra.mxu0 %v666
        %973 = vmatprep.subr.mxu0 0.0
        %974 = vmatpush1.msra.mxu0 0.0
        %975 = vmatprep.subr.mxu0 0.0
        %976 = vmatpush1.msra.mxu0 0.0
        %977 = vmatprep.subr.mxu0 0.0
        %978 = vmatpush1.msra.mxu0 0.0
        %979 = vmatprep.subr.mxu0 0.0
        %980 = vmatpush1.msra.mxu0 0.0
        %981 = vmatprep.subr.mxu0 0.0
        %982 = vmatpush1.msra.mxu0 0.0
        %983 = vmatprep.subr.mxu0 0.0
        %984 = vmatpush1.msra.mxu0 0.0
        %985 = vmatprep.subr.mxu0 0.0
        %986 = vmatpush1.msra.mxu0 0.0
        %987 = vmatprep.subr.mxu0 0.0
        %988 = vmatpush1.msra.mxu0 0.0
        %989 = vmatprep.subr.mxu0 0.0
        %990 = vmatpush1.msra.mxu0 0.0
        %991 = vmatprep.subr.mxu0 0.0
        %992 = vmatpush1.msra.mxu0 0.0
        %993 = vmatprep.subr.mxu0 0.0
        %994 = vmatpush1.msra.mxu0 0.0
        %995 = vmatprep.subr.mxu0 0.0
        %996 = vmatpush1.msra.mxu0 0.0
        %997 = vmatprep.subr.mxu0 0.0
        %998 = vmatpush1.msra.mxu0 0.0
        %999 = vmatprep.subr.mxu0 0.0
        %1000 = vmatpush1.msra.mxu0 0.0
        %1001 = vmatprep.subr.mxu0 0.0
        %1002 = vmatpush1.msra.mxu0 0.0
        %1003 = vmatprep.subr.mxu0 0.0
        %1004 = vmatpush1.msra.mxu0 0.0
        %1005 = vmatprep.mubr.f32.mxu0 0.0
        %1006 = vmatmul.mubr.f32.gmra.mrb[0].mxu0 %v869
        %v1007 = vpop.f32.mrb[0].mxu0
        %v1008 = vadd.f32 0.0, %v1007
        %v1009 = vpop.f32.mrb[0].mxu0
        %1010 = vdwg.mxu0
        %v1011 = vadd.f32 %v520, %v937
        %v1012 = vadd.f32 %v548, %v939
        %v1013 = vadd.f32 %v613, %v1008
        %v1014 = vxor.u32 %v1011, 2147483648
        %v1015 = vmul.f32 %v1014, 1.442695
        %v1016 = vpow.pop %v1015
        %v1017 = vadd.f32 %v1016, 1.0
        %v1018 = vrcp.pop %v1017
        %v1019 = vmul.f32 1.0, %v1018
        %v1020 = vadd.f32 %v939, %v822
        %v1021 = vmul.f32 %v1019, %v1020
        %v1022 = vadd.f32 %v522, %v1021
        %v1023 = vtanh.pop %v1022
        %v1024 = vxor.u32 %v1012, 2147483648
        %v1025 = vmul.f32 %v1024, 1.442695
        %v1026 = vpow.pop %v1025
        %v1027 = vadd.f32 %v1026, 1.0
        %v1028 = vrcp.pop %v1027
        %v1029 = vmul.f32 1.0, %v1028
        %v1030 = vxor.u32 %v1013, 2147483648
        %v1031 = vmul.f32 %v1030, 1.442695
        %v1032 = vpow.pop %v1031
        %v1033 = vadd.f32 %v1032, 1.0
        %v1034 = vrcp.pop %v1033
        %v1035 = vmul.f32 1.0, %v1034
        %v1036 = vadd.f32 %v1008, %v822
        %v1037 = vmul.f32 %v1029, %v1036
        %v1038 = vadd.f32 %v613, %v1037
        %v1039 = vtanh.pop %v1038
        %v1040 = vsub.f32 1.0, %v1019
        %1042 = vrot.lane.b32.xlu0 %v1023, 64
        %v1043 = vpop.permute.xlu0 %1042
        %v1045 = vmul.f32 %v1040, %v1043
        %1047 = vrot.lane.b32.xlu0 %v869, 64
        %v1048 = vpop.permute.xlu0 %1047
        %v1050 = vmul.f32 %v1019, %v1048
        %v1051 = vadd.f32 %v1045, %v1050
        %v1052 = vsub.f32 1.0, %v1035
        %1054 = vrot.lane.b32.xlu0 %v1039, 64
        %v1055 = vpop.permute.xlu0 %1054
        %v1057 = vmul.f32 %v1052, %v1055
        %v1058 = vmul.f32 %v1035, %v1048
        %v1059 = vadd.f32 %v1057, %v1058
        %1061 = vrot.lane.b32.xlu0 %v1051, 64
        %v1062 = vpop.permute.xlu0 %1061
        %1065 = vrot.lane.b32.xlu0 %v1059, 64
        %v1066 = vpop.permute.xlu0 %1065
        %v1068 = vsel %vm868, %v1062, %v1066
        %1069 = vmatprep.subr.mxu0 %v620
        %1070 = vmatpush1.msra.mxu0 %v619
        %1071 = vmatprep.subr.mxu0 %v623
        %1072 = vmatpush1.msra.mxu0 %v622
        %1073 = vmatprep.subr.mxu0 %v626
        %1074 = vmatpush1.msra.mxu0 %v625
        %1075 = vmatprep.subr.mxu0 %v629
        %1076 = vmatpush1.msra.mxu0 %v628
        %1077 = vmatprep.subr.mxu0 %v632
        %1078 = vmatpush1.msra.mxu0 %v631
        %1079 = vmatprep.subr.mxu0 %v635
        %1080 = vmatpush1.msra.mxu0 %v634
        %1081 = vmatprep.subr.mxu0 %v638
        %1082 = vmatpush1.msra.mxu0 %v637
        %1083 = vmatprep.subr.mxu0 %v641
        %1084 = vmatpush1.msra.mxu0 %v640
        %1085 = vmatprep.subr.mxu0 %v644
        %1086 = vmatpush1.msra.mxu0 %v643
        %1087 = vmatprep.subr.mxu0 %v647
        %1088 = vmatpush1.msra.mxu0 %v646
        %1089 = vmatprep.subr.mxu0 %v650
        %1090 = vmatpush1.msra.mxu0 %v649
        %1091 = vmatprep.subr.mxu0 %v653
        %1092 = vmatpush1.msra.mxu0 %v652
        %1093 = vmatprep.subr.mxu0 %v656
        %1094 = vmatpush1.msra.mxu0 %v655
        %1095 = vmatprep.subr.mxu0 %v659
        %1096 = vmatpush1.msra.mxu0 %v658
        %1097 = vmatprep.subr.mxu0 %v662
        %1098 = vmatpush1.msra.mxu0 %v661
        %1099 = vmatprep.subr.mxu0 %v665
        %1100 = vmatpush1.msra.mxu0 %v664
        %1101 = vmatprep.subr.mxu0 0.0
        %1102 = vmatpush1.msra.mxu0 0.0
        %1103 = vmatprep.subr.mxu0 0.0
        %1104 = vmatpush1.msra.mxu0 0.0
        %1105 = vmatprep.subr.mxu0 0.0
        %1106 = vmatpush1.msra.mxu0 0.0
        %1107 = vmatprep.subr.mxu0 0.0
        %1108 = vmatpush1.msra.mxu0 0.0
        %1109 = vmatprep.subr.mxu0 0.0
        %1110 = vmatpush1.msra.mxu0 0.0
        %1111 = vmatprep.subr.mxu0 0.0
        %1112 = vmatpush1.msra.mxu0 0.0
        %1113 = vmatprep.subr.mxu0 0.0
        %1114 = vmatpush1.msra.mxu0 0.0
        %1115 = vmatprep.subr.mxu0 0.0
        %1116 = vmatpush1.msra.mxu0 0.0
        %1117 = vmatprep.subr.mxu0 0.0
        %1118 = vmatpush1.msra.mxu0 0.0
        %1119 = vmatprep.subr.mxu0 0.0
        %1120 = vmatpush1.msra.mxu0 0.0
        %1121 = vmatprep.subr.mxu0 0.0
        %1122 = vmatpush1.msra.mxu0 0.0
        %1123 = vmatprep.subr.mxu0 0.0
        %1124 = vmatpush1.msra.mxu0 0.0
        %1125 = vmatprep.subr.mxu0 0.0
        %1126 = vmatpush1.msra.mxu0 0.0
        %1127 = vmatprep.subr.mxu0 0.0
        %1128 = vmatpush1.msra.mxu0 0.0
        %1129 = vmatprep.subr.mxu0 0.0
        %1130 = vmatpush1.msra.mxu0 0.0
        %1131 = vmatprep.subr.mxu0 0.0
        %1132 = vmatpush1.msra.mxu0 0.0
        %1133 = vmatprep.mubr.f32.mxu0 0.0
        %1134 = vmatmul.mubr.f32.gmra.mrb[0].mxu0 %v1068
        %v1135 = vpop.f32.mrb[0].mxu0
        %v1136 = vadd.f32 0.0, %v1135
        %v1137 = vpop.f32.mrb[0].mxu0
        %v1138 = vadd.f32 0.0, %v1137
        %1139 = vdwg.mxu0
        %1140 = vmatprep.subr.mxu0 0.0
        %1141 = vmatpush1.msra.mxu0 %v621
        %1142 = vmatprep.subr.mxu0 0.0
        %1143 = vmatpush1.msra.mxu0 %v624
        %1144 = vmatprep.subr.mxu0 0.0
        %1145 = vmatpush1.msra.mxu0 %v627
        %1146 = vmatprep.subr.mxu0 0.0
        %1147 = vmatpush1.msra.mxu0 %v630
        %1148 = vmatprep.subr.mxu0 0.0
        %1149 = vmatpush1.msra.mxu0 %v633
        %1150 = vmatprep.subr.mxu0 0.0
        %1151 = vmatpush1.msra.mxu0 %v636
        %1152 = vmatprep.subr.mxu0 0.0
        %1153 = vmatpush1.msra.mxu0 %v639
        %1154 = vmatprep.subr.mxu0 0.0
        %1155 = vmatpush1.msra.mxu0 %v642
        %1156 = vmatprep.subr.mxu0 0.0
        %1157 = vmatpush1.msra.mxu0 %v645
        %1158 = vmatprep.subr.mxu0 0.0
        %1159 = vmatpush1.msra.mxu0 %v648
        %1160 = vmatprep.subr.mxu0 0.0
        %1161 = vmatpush1.msra.mxu0 %v651
        %1162 = vmatprep.subr.mxu0 0.0
        %1163 = vmatpush1.msra.mxu0 %v654
        %1164 = vmatprep.subr.mxu0 0.0
        %1165 = vmatpush1.msra.mxu0 %v657
        %1166 = vmatprep.subr.mxu0 0.0
        %1167 = vmatpush1.msra.mxu0 %v660
        %1168 = vmatprep.subr.mxu0 0.0
        %1169 = vmatpush1.msra.mxu0 %v663
        %1170 = vmatprep.subr.mxu0 0.0
        %1171 = vmatpush1.msra.mxu0 %v666
        %1172 = vmatprep.subr.mxu0 0.0
        %1173 = vmatpush1.msra.mxu0 0.0
        %1174 = vmatprep.subr.mxu0 0.0
        %1175 = vmatpush1.msra.mxu0 0.0
        %1176 = vmatprep.subr.mxu0 0.0
        %1177 = vmatpush1.msra.mxu0 0.0
        %1178 = vmatprep.subr.mxu0 0.0
        %1179 = vmatpush1.msra.mxu0 0.0
        %1180 = vmatprep.subr.mxu0 0.0
        %1181 = vmatpush1.msra.mxu0 0.0
        %1182 = vmatprep.subr.mxu0 0.0
        %1183 = vmatpush1.msra.mxu0 0.0
        %1184 = vmatprep.subr.mxu0 0.0
        %1185 = vmatpush1.msra.mxu0 0.0
        %1186 = vmatprep.subr.mxu0 0.0
        %1187 = vmatpush1.msra.mxu0 0.0
        %1188 = vmatprep.subr.mxu0 0.0
        %1189 = vmatpush1.msra.mxu0 0.0
        %1190 = vmatprep.subr.mxu0 0.0
        %1191 = vmatpush1.msra.mxu0 0.0
        %1192 = vmatprep.subr.mxu0 0.0
        %1193 = vmatpush1.msra.mxu0 0.0
        %1194 = vmatprep.subr.mxu0 0.0
        %1195 = vmatpush1.msra.mxu0 0.0
        %1196 = vmatprep.subr.mxu0 0.0
        %1197 = vmatpush1.msra.mxu0 0.0
        %1198 = vmatprep.subr.mxu0 0.0
        %1199 = vmatpush1.msra.mxu0 0.0
        %1200 = vmatprep.subr.mxu0 0.0
        %1201 = vmatpush1.msra.mxu0 0.0
        %1202 = vmatprep.subr.mxu0 0.0
        %1203 = vmatpush1.msra.mxu0 0.0
        %1204 = vmatprep.mubr.f32.mxu0 0.0
        %1205 = vmatmul.mubr.f32.gmra.mrb[0].mxu0 %v1068
        %v1206 = vpop.f32.mrb[0].mxu0
        %v1207 = vadd.f32 0.0, %v1206
        %v1208 = vpop.f32.mrb[0].mxu0
        %1209 = vdwg.mxu0
        %v1210 = vadd.f32 %v526, %v1136
        %v1211 = vadd.f32 %v542, %v1138
        %v1212 = vadd.f32 %v608, %v1207
        %v1213 = vxor.u32 %v1210, 2147483648
        %v1214 = vmul.f32 %v1213, 1.442695
        %v1215 = vpow.pop %v1214
        %v1216 = vadd.f32 %v1215, 1.0
        %v1217 = vrcp.pop %v1216
        %v1218 = vmul.f32 1.0, %v1217
        %v1219 = vadd.f32 %v1138, %v822
        %v1220 = vmul.f32 %v1218, %v1219
        %v1221 = vadd.f32 %v528, %v1220
        %v1222 = vtanh.pop %v1221
        %v1223 = vxor.u32 %v1211, 2147483648
        %v1224 = vmul.f32 %v1223, 1.442695
        %v1225 = vpow.pop %v1224
        %v1226 = vadd.f32 %v1225, 1.0
        %v1227 = vrcp.pop %v1226
        %v1228 = vmul.f32 1.0, %v1227
        %v1229 = vxor.u32 %v1212, 2147483648
        %v1230 = vmul.f32 %v1229, 1.442695
        %v1231 = vpow.pop %v1230
        %v1232 = vadd.f32 %v1231, 1.0
        %v1233 = vrcp.pop %v1232
        %v1234 = vmul.f32 1.0, %v1233
        %v1235 = vadd.f32 %v1207, %v822
        %v1236 = vmul.f32 %v1228, %v1235
        %v1237 = vadd.f32 %v608, %v1236
        %v1238 = vtanh.pop %v1237
        %v1239 = vsub.f32 1.0, %v1218
        %1241 = vrot.lane.b32.xlu0 %v1222, 64
        %v1242 = vpop.permute.xlu0 %1241
        %v1244 = vmul.f32 %v1239, %v1242
        %1246 = vrot.lane.b32.xlu0 %v1068, 64
        %v1247 = vpop.permute.xlu0 %1246
        %v1249 = vmul.f32 %v1218, %v1247
        %v1250 = vadd.f32 %v1244, %v1249
        %v1251 = vsub.f32 1.0, %v1234
        %1253 = vrot.lane.b32.xlu0 %v1238, 64
        %v1254 = vpop.permute.xlu0 %1253
        %v1256 = vmul.f32 %v1251, %v1254
        %v1257 = vmul.f32 %v1234, %v1247
        %v1258 = vadd.f32 %v1256, %v1257
        %1260 = vrot.lane.b32.xlu0 %v1250, 64
        %v1261 = vpop.permute.xlu0 %1260
        %1264 = vrot.lane.b32.xlu0 %v1258, 64
        %v1265 = vpop.permute.xlu0 %1264
        %v1267 = vsel %vm868, %v1261, %v1265
        %1268 = vmatprep.subr.mxu0 %v620
        %1269 = vmatpush1.msra.mxu0 %v619
        %1270 = vmatprep.subr.mxu0 %v623
        %1271 = vmatpush1.msra.mxu0 %v622
        %1272 = vmatprep.subr.mxu0 %v626
        %1273 = vmatpush1.msra.mxu0 %v625
        %1274 = vmatprep.subr.mxu0 %v629
        %1275 = vmatpush1.msra.mxu0 %v628
        %1276 = vmatprep.subr.mxu0 %v632
        %1277 = vmatpush1.msra.mxu0 %v631
        %1278 = vmatprep.subr.mxu0 %v635
        %1279 = vmatpush1.msra.mxu0 %v634
        %1280 = vmatprep.subr.mxu0 %v638
        %1281 = vmatpush1.msra.mxu0 %v637
        %1282 = vmatprep.subr.mxu0 %v641
        %1283 = vmatpush1.msra.mxu0 %v640
        %1284 = vmatprep.subr.mxu0 %v644
        %1285 = vmatpush1.msra.mxu0 %v643
        %1286 = vmatprep.subr.mxu0 %v647
        %1287 = vmatpush1.msra.mxu0 %v646
        %1288 = vmatprep.subr.mxu0 %v650
        %1289 = vmatpush1.msra.mxu0 %v649
        %1290 = vmatprep.subr.mxu0 %v653
        %1291 = vmatpush1.msra.mxu0 %v652
        %1292 = vmatprep.subr.mxu0 %v656
        %1293 = vmatpush1.msra.mxu0 %v655
        %1294 = vmatprep.subr.mxu0 %v659
        %1295 = vmatpush1.msra.mxu0 %v658
        %1296 = vmatprep.subr.mxu0 %v662
        %1297 = vmatpush1.msra.mxu0 %v661
        %1298 = vmatprep.subr.mxu0 %v665
        %1299 = vmatpush1.msra.mxu0 %v664
        %1300 = vmatprep.subr.mxu0 0.0
        %1301 = vmatpush1.msra.mxu0 0.0
        %1302 = vmatprep.subr.mxu0 0.0
        %1303 = vmatpush1.msra.mxu0 0.0
        %1304 = vmatprep.subr.mxu0 0.0
        %1305 = vmatpush1.msra.mxu0 0.0
        %1306 = vmatprep.subr.mxu0 0.0
        %1307 = vmatpush1.msra.mxu0 0.0
        %1308 = vmatprep.subr.mxu0 0.0
        %1309 = vmatpush1.msra.mxu0 0.0
        %1310 = vmatprep.subr.mxu0 0.0
        %1311 = vmatpush1.msra.mxu0 0.0
        %1312 = vmatprep.subr.mxu0 0.0
        %1313 = vmatpush1.msra.mxu0 0.0
        %1314 = vmatprep.subr.mxu0 0.0
        %1315 = vmatpush1.msra.mxu0 0.0
        %1316 = vmatprep.subr.mxu0 0.0
        %1317 = vmatpush1.msra.mxu0 0.0
        %1318 = vmatprep.subr.mxu0 0.0
        %1319 = vmatpush1.msra.mxu0 0.0
        %1320 = vmatprep.subr.mxu0 0.0
        %1321 = vmatpush1.msra.mxu0 0.0
        %1322 = vmatprep.subr.mxu0 0.0
        %1323 = vmatpush1.msra.mxu0 0.0
        %1324 = vmatprep.subr.mxu0 0.0
        %1325 = vmatpush1.msra.mxu0 0.0
        %1326 = vmatprep.subr.mxu0 0.0
        %1327 = vmatpush1.msra.mxu0 0.0
        %1328 = vmatprep.subr.mxu0 0.0
        %1329 = vmatpush1.msra.mxu0 0.0
        %1330 = vmatprep.subr.mxu0 0.0
        %1331 = vmatpush1.msra.mxu0 0.0
        %1332 = vmatprep.mubr.f32.mxu0 0.0
        %1333 = vmatmul.mubr.f32.gmra.mrb[0].mxu0 %v1267
        %v1334 = vpop.f32.mrb[0].mxu0
        %v1335 = vadd.f32 0.0, %v1334
        %v1336 = vpop.f32.mrb[0].mxu0
        %v1337 = vadd.f32 0.0, %v1336
        %1338 = vdwg.mxu0
        %1339 = vmatprep.subr.mxu0 0.0
        %1340 = vmatpush1.msra.mxu0 %v621
        %1341 = vmatprep.subr.mxu0 0.0
        %1342 = vmatpush1.msra.mxu0 %v624
        %1343 = vmatprep.subr.mxu0 0.0
        %1344 = vmatpush1.msra.mxu0 %v627
        %1345 = vmatprep.subr.mxu0 0.0
        %1346 = vmatpush1.msra.mxu0 %v630
        %1347 = vmatprep.subr.mxu0 0.0
        %1348 = vmatpush1.msra.mxu0 %v633
        %1349 = vmatprep.subr.mxu0 0.0
        %1350 = vmatpush1.msra.mxu0 %v636
        %1351 = vmatprep.subr.mxu0 0.0
        %1352 = vmatpush1.msra.mxu0 %v639
        %1353 = vmatprep.subr.mxu0 0.0
        %1354 = vmatpush1.msra.mxu0 %v642
        %1355 = vmatprep.subr.mxu0 0.0
        %1356 = vmatpush1.msra.mxu0 %v645
        %1357 = vmatprep.subr.mxu0 0.0
        %1358 = vmatpush1.msra.mxu0 %v648
        %1359 = vmatprep.subr.mxu0 0.0
        %1360 = vmatpush1.msra.mxu0 %v651
        %1361 = vmatprep.subr.mxu0 0.0
        %1362 = vmatpush1.msra.mxu0 %v654
        %1363 = vmatprep.subr.mxu0 0.0
        %1364 = vmatpush1.msra.mxu0 %v657
        %1365 = vmatprep.subr.mxu0 0.0
        %1366 = vmatpush1.msra.mxu0 %v660
        %1367 = vmatprep.subr.mxu0 0.0
        %1368 = vmatpush1.msra.mxu0 %v663
        %1369 = vmatprep.subr.mxu0 0.0
        %1370 = vmatpush1.msra.mxu0 %v666
        %1371 = vmatprep.subr.mxu0 0.0
        %1372 = vmatpush1.msra.mxu0 0.0
        %1373 = vmatprep.subr.mxu0 0.0
        %1374 = vmatpush1.msra.mxu0 0.0
        %1375 = vmatprep.subr.mxu0 0.0
        %1376 = vmatpush1.msra.mxu0 0.0
        %1377 = vmatprep.subr.mxu0 0.0
        %1378 = vmatpush1.msra.mxu0 0.0
        %1379 = vmatprep.subr.mxu0 0.0
        %1380 = vmatpush1.msra.mxu0 0.0
        %1381 = vmatprep.subr.mxu0 0.0
        %1382 = vmatpush1.msra.mxu0 0.0
        %1383 = vmatprep.subr.mxu0 0.0
        %1384 = vmatpush1.msra.mxu0 0.0
        %1385 = vmatprep.subr.mxu0 0.0
        %1386 = vmatpush1.msra.mxu0 0.0
        %1387 = vmatprep.subr.mxu0 0.0
        %1388 = vmatpush1.msra.mxu0 0.0
        %1389 = vmatprep.subr.mxu0 0.0
        %1390 = vmatpush1.msra.mxu0 0.0
        %1391 = vmatprep.subr.mxu0 0.0
        %1392 = vmatpush1.msra.mxu0 0.0
        %1393 = vmatprep.subr.mxu0 0.0
        %1394 = vmatpush1.msra.mxu0 0.0
        %1395 = vmatprep.subr.mxu0 0.0
        %1396 = vmatpush1.msra.mxu0 0.0
        %1397 = vmatprep.subr.mxu0 0.0
        %1398 = vmatpush1.msra.mxu0 0.0
        %1399 = vmatprep.subr.mxu0 0.0
        %1400 = vmatpush1.msra.mxu0 0.0
        %1401 = vmatprep.subr.mxu0 0.0
        %1402 = vmatpush1.msra.mxu0 0.0
        %1403 = vmatprep.mubr.f32.mxu0 0.0
        %1404 = vmatmul.mubr.f32.gmra.mrb[0].mxu0 %v1267
        %v1405 = vpop.f32.mrb[0].mxu0
        %v1406 = vadd.f32 0.0, %v1405
        %v1407 = vpop.f32.mrb[0].mxu0
        %1408 = vdwg.mxu0
        %v1409 = vadd.f32 %v530, %v1335
        %v1410 = vadd.f32 %v538, %v1337
        %v1411 = vadd.f32 %v605, %v1406
        %v1412 = vxor.u32 %v1409, 2147483648
        %v1413 = vmul.f32 %v1412, 1.442695
        %v1414 = vpow.pop %v1413
        %v1415 = vadd.f32 %v1414, 1.0
        %v1416 = vrcp.pop %v1415
        %v1417 = vmul.f32 1.0, %v1416
        %v1418 = vadd.f32 %v1337, %v822
        %v1419 = vmul.f32 %v1417, %v1418
        %v1420 = vadd.f32 %v532, %v1419
        %v1421 = vtanh.pop %v1420
        %v1422 = vxor.u32 %v1410, 2147483648
        %v1423 = vmul.f32 %v1422, 1.442695
        %v1424 = vpow.pop %v1423
        %v1425 = vadd.f32 %v1424, 1.0
        %v1426 = vrcp.pop %v1425
        %v1427 = vmul.f32 1.0, %v1426
        %v1428 = vxor.u32 %v1411, 2147483648
        %v1429 = vmul.f32 %v1428, 1.442695
        %v1430 = vpow.pop %v1429
        %v1431 = vadd.f32 %v1430, 1.0
        %v1432 = vrcp.pop %v1431
        %v1433 = vmul.f32 1.0, %v1432
        %v1434 = vadd.f32 %v1406, %v822
        %v1435 = vmul.f32 %v1427, %v1434
        %v1436 = vadd.f32 %v605, %v1435
        %v1437 = vtanh.pop %v1436
        %v1438 = vsub.f32 1.0, %v1417
        %1440 = vrot.lane.b32.xlu0 %v1421, 64
        %v1441 = vpop.permute.xlu0 %1440
        %v1443 = vmul.f32 %v1438, %v1441
        %1445 = vrot.lane.b32.xlu0 %v1267, 64
        %v1446 = vpop.permute.xlu0 %1445
        %v1448 = vmul.f32 %v1417, %v1446
        %v1449 = vadd.f32 %v1443, %v1448
        %v1450 = vsub.f32 1.0, %v1433
        %1452 = vrot.lane.b32.xlu0 %v1437, 64
        %v1453 = vpop.permute.xlu0 %1452
        %v1455 = vmul.f32 %v1450, %v1453
        %v1456 = vmul.f32 %v1433, %v1446
        %v1457 = vadd.f32 %v1455, %v1456
        %1459 = vrot.lane.b32.xlu0 %v1449, 64
        %v1460 = vpop.permute.xlu0 %1459
        %1463 = vrot.lane.b32.xlu0 %v1457, 64
        %v1464 = vpop.permute.xlu0 %1463
        %v1466 = vsel %vm868, %v1460, %v1464
        %1467 = vmatprep.subr.mxu0 %v620
        %1468 = vmatpush1.msra.mxu0 %v619
        %1469 = vmatprep.subr.mxu0 %v623
        %1470 = vmatpush1.msra.mxu0 %v622
        %1471 = vmatprep.subr.mxu0 %v626
        %1472 = vmatpush1.msra.mxu0 %v625
        %1473 = vmatprep.subr.mxu0 %v629
        %1474 = vmatpush1.msra.mxu0 %v628
        %1475 = vmatprep.subr.mxu0 %v632
        %1476 = vmatpush1.msra.mxu0 %v631
        %1477 = vmatprep.subr.mxu0 %v635
        %1478 = vmatpush1.msra.mxu0 %v634
        %1479 = vmatprep.subr.mxu0 %v638
        %1480 = vmatpush1.msra.mxu0 %v637
        %1481 = vmatprep.subr.mxu0 %v641
        %1482 = vmatpush1.msra.mxu0 %v640
        %1483 = vmatprep.subr.mxu0 %v644
        %1484 = vmatpush1.msra.mxu0 %v643
        %1485 = vmatprep.subr.mxu0 %v647
        %1486 = vmatpush1.msra.mxu0 %v646
        %1487 = vmatprep.subr.mxu0 %v650
        %1488 = vmatpush1.msra.mxu0 %v649
        %1489 = vmatprep.subr.mxu0 %v653
        %1490 = vmatpush1.msra.mxu0 %v652
        %1491 = vmatprep.subr.mxu0 %v656
        %1492 = vmatpush1.msra.mxu0 %v655
        %1493 = vmatprep.subr.mxu0 %v659
        %1494 = vmatpush1.msra.mxu0 %v658
        %1495 = vmatprep.subr.mxu0 %v662
        %1496 = vmatpush1.msra.mxu0 %v661
        %1497 = vmatprep.subr.mxu0 %v665
        %1498 = vmatpush1.msra.mxu0 %v664
        %1499 = vmatprep.subr.mxu0 0.0
        %1500 = vmatpush1.msra.mxu0 0.0
        %1501 = vmatprep.subr.mxu0 0.0
        %1502 = vmatpush1.msra.mxu0 0.0
        %1503 = vmatprep.subr.mxu0 0.0
        %1504 = vmatpush1.msra.mxu0 0.0
        %1505 = vmatprep.subr.mxu0 0.0
        %1506 = vmatpush1.msra.mxu0 0.0
        %1507 = vmatprep.subr.mxu0 0.0
        %1508 = vmatpush1.msra.mxu0 0.0
        %1509 = vmatprep.subr.mxu0 0.0
        %1510 = vmatpush1.msra.mxu0 0.0
        %1511 = vmatprep.subr.mxu0 0.0
        %1512 = vmatpush1.msra.mxu0 0.0
        %1513 = vmatprep.subr.mxu0 0.0
        %1514 = vmatpush1.msra.mxu0 0.0
        %1515 = vmatprep.subr.mxu0 0.0
        %1516 = vmatpush1.msra.mxu0 0.0
        %1517 = vmatprep.subr.mxu0 0.0
        %1518 = vmatpush1.msra.mxu0 0.0
        %1519 = vmatprep.subr.mxu0 0.0
        %1520 = vmatpush1.msra.mxu0 0.0
        %1521 = vmatprep.subr.mxu0 0.0
        %1522 = vmatpush1.msra.mxu0 0.0
        %1523 = vmatprep.subr.mxu0 0.0
        %1524 = vmatpush1.msra.mxu0 0.0
        %1525 = vmatprep.subr.mxu0 0.0
        %1526 = vmatpush1.msra.mxu0 0.0
        %1527 = vmatprep.subr.mxu0 0.0
        %1528 = vmatpush1.msra.mxu0 0.0
        %1529 = vmatprep.subr.mxu0 0.0
        %1530 = vmatpush1.msra.mxu0 0.0
        %1531 = vmatprep.mubr.f32.mxu0 0.0
        %1532 = vmatmul.mubr.f32.gmra.mrb[0].mxu0 %v1466
        %v1533 = vpop.f32.mrb[0].mxu0
        %v1534 = vadd.f32 0.0, %v1533
        %v1535 = vpop.f32.mrb[0].mxu0
        %v1536 = vadd.f32 0.0, %v1535
        %1537 = vdwg.mxu0
        %1538 = vmatprep.subr.mxu0 0.0
        %1539 = vmatpush1.msra.mxu0 %v621
        %1540 = vmatprep.subr.mxu0 0.0
        %1541 = vmatpush1.msra.mxu0 %v624
        %1542 = vmatprep.subr.mxu0 0.0
        %1543 = vmatpush1.msra.mxu0 %v627
        %1544 = vmatprep.subr.mxu0 0.0
        %1545 = vmatpush1.msra.mxu0 %v630
        %1546 = vmatprep.subr.mxu0 0.0
        %1547 = vmatpush1.msra.mxu0 %v633
        %1548 = vmatprep.subr.mxu0 0.0
        %1549 = vmatpush1.msra.mxu0 %v636
        %1550 = vmatprep.subr.mxu0 0.0
        %1551 = vmatpush1.msra.mxu0 %v639
        %1552 = vmatprep.subr.mxu0 0.0
        %1553 = vmatpush1.msra.mxu0 %v642
        %1554 = vmatprep.subr.mxu0 0.0
        %1555 = vmatpush1.msra.mxu0 %v645
        %1556 = vmatprep.subr.mxu0 0.0
        %1557 = vmatpush1.msra.mxu0 %v648
        %1558 = vmatprep.subr.mxu0 0.0
        %1559 = vmatpush1.msra.mxu0 %v651
        %1560 = vmatprep.subr.mxu0 0.0
        %1561 = vmatpush1.msra.mxu0 %v654
        %1562 = vmatprep.subr.mxu0 0.0
        %1563 = vmatpush1.msra.mxu0 %v657
        %1564 = vmatprep.subr.mxu0 0.0
        %1565 = vmatpush1.msra.mxu0 %v660
        %1566 = vmatprep.subr.mxu0 0.0
        %1567 = vmatpush1.msra.mxu0 %v663
        %1568 = vmatprep.subr.mxu0 0.0
        %1569 = vmatpush1.msra.mxu0 %v666
        %1570 = vmatprep.subr.mxu0 0.0
        %1571 = vmatpush1.msra.mxu0 0.0
        %1572 = vmatprep.subr.mxu0 0.0
        %1573 = vmatpush1.msra.mxu0 0.0
        %1574 = vmatprep.subr.mxu0 0.0
        %1575 = vmatpush1.msra.mxu0 0.0
        %1576 = vmatprep.subr.mxu0 0.0
        %1577 = vmatpush1.msra.mxu0 0.0
        %1578 = vmatprep.subr.mxu0 0.0
        %1579 = vmatpush1.msra.mxu0 0.0
        %1580 = vmatprep.subr.mxu0 0.0
        %1581 = vmatpush1.msra.mxu0 0.0
        %1582 = vmatprep.subr.mxu0 0.0
        %1583 = vmatpush1.msra.mxu0 0.0
        %1584 = vmatprep.subr.mxu0 0.0
        %1585 = vmatpush1.msra.mxu0 0.0
        %1586 = vmatprep.subr.mxu0 0.0
        %1587 = vmatpush1.msra.mxu0 0.0
        %1588 = vmatprep.subr.mxu0 0.0
        %1589 = vmatpush1.msra.mxu0 0.0
        %1590 = vmatprep.subr.mxu0 0.0
        %1591 = vmatpush1.msra.mxu0 0.0
        %1592 = vmatprep.subr.mxu0 0.0
        %1593 = vmatpush1.msra.mxu0 0.0
        %1594 = vmatprep.subr.mxu0 0.0
        %1595 = vmatpush1.msra.mxu0 0.0
        %1596 = vmatprep.subr.mxu0 0.0
        %1597 = vmatpush1.msra.mxu0 0.0
        %1598 = vmatprep.subr.mxu0 0.0
        %1599 = vmatpush1.msra.mxu0 0.0
        %1600 = vmatprep.subr.mxu0 0.0
        %1601 = vmatpush1.msra.mxu0 0.0
        %1602 = vmatprep.mubr.f32.mxu0 0.0
        %1603 = vmatmul.mubr.f32.gmra.mrb[0].mxu0 %v1466
        %v1604 = vpop.f32.mrb[0].mxu0
        %v1605 = vadd.f32 0.0, %v1604
        %v1606 = vpop.f32.mrb[0].mxu0
        %1607 = vdwg.mxu0
        %v1608 = vadd.f32 %v536, %v1534
        %v1609 = vadd.f32 %v532, %v1536
        %v1610 = vadd.f32 %v600, %v1605
        %v1611 = vxor.u32 %v1608, 2147483648
        %v1612 = vmul.f32 %v1611, 1.442695
        %v1613 = vpow.pop %v1612
        %v1614 = vadd.f32 %v1613, 1.0
        %v1615 = vrcp.pop %v1614
        %v1616 = vmul.f32 1.0, %v1615
        %v1617 = vadd.f32 %v1536, %v822
        %v1618 = vmul.f32 %v1616, %v1617
        %v1619 = vadd.f32 %v538, %v1618
        %v1620 = vtanh.pop %v1619
        %v1621 = vxor.u32 %v1609, 2147483648
        %v1622 = vmul.f32 %v1621, 1.442695
        %v1623 = vpow.pop %v1622
        %v1624 = vadd.f32 %v1623, 1.0
        %v1625 = vrcp.pop %v1624
        %v1626 = vmul.f32 1.0, %v1625
        %v1627 = vxor.u32 %v1610, 2147483648
        %v1628 = vmul.f32 %v1627, 1.442695
        %v1629 = vpow.pop %v1628
        %v1630 = vadd.f32 %v1629, 1.0
        %v1631 = vrcp.pop %v1630
        %v1632 = vmul.f32 1.0, %v1631
        %v1633 = vadd.f32 %v1605, %v822
        %v1634 = vmul.f32 %v1626, %v1633
        %v1635 = vadd.f32 %v600, %v1634
        %v1636 = vtanh.pop %v1635
        %v1637 = vsub.f32 1.0, %v1616
        %1639 = vrot.lane.b32.xlu0 %v1620, 64
        %v1640 = vpop.permute.xlu0 %1639
        %v1642 = vmul.f32 %v1637, %v1640
        %1644 = vrot.lane.b32.xlu0 %v1466, 64
        %v1645 = vpop.permute.xlu0 %1644
        %v1647 = vmul.f32 %v1616, %v1645
        %v1648 = vadd.f32 %v1642, %v1647
        %v1649 = vsub.f32 1.0, %v1632
        %1651 = vrot.lane.b32.xlu0 %v1636, 64
        %v1652 = vpop.permute.xlu0 %1651
        %v1654 = vmul.f32 %v1649, %v1652
        %v1655 = vmul.f32 %v1632, %v1645
        %v1656 = vadd.f32 %v1654, %v1655
        %1658 = vrot.lane.b32.xlu0 %v1648, 64
        %v1659 = vpop.permute.xlu0 %1658
        %1662 = vrot.lane.b32.xlu0 %v1656, 64
        %v1663 = vpop.permute.xlu0 %1662
        %v1665 = vsel %vm868, %v1659, %v1663
        %1666 = vmatprep.subr.mxu0 %v620
        %1667 = vmatpush1.msra.mxu0 %v619
        %1668 = vmatprep.subr.mxu0 %v623
        %1669 = vmatpush1.msra.mxu0 %v622
        %1670 = vmatprep.subr.mxu0 %v626
        %1671 = vmatpush1.msra.mxu0 %v625
        %1672 = vmatprep.subr.mxu0 %v629
        %1673 = vmatpush1.msra.mxu0 %v628
        %1674 = vmatprep.subr.mxu0 %v632
        %1675 = vmatpush1.msra.mxu0 %v631
        %1676 = vmatprep.subr.mxu0 %v635
        %1677 = vmatpush1.msra.mxu0 %v634
        %1678 = vmatprep.subr.mxu0 %v638
        %1679 = vmatpush1.msra.mxu0 %v637
        %1680 = vmatprep.subr.mxu0 %v641
        %1681 = vmatpush1.msra.mxu0 %v640
        %1682 = vmatprep.subr.mxu0 %v644
        %1683 = vmatpush1.msra.mxu0 %v643
        %1684 = vmatprep.subr.mxu0 %v647
        %1685 = vmatpush1.msra.mxu0 %v646
        %1686 = vmatprep.subr.mxu0 %v650
        %1687 = vmatpush1.msra.mxu0 %v649
        %1688 = vmatprep.subr.mxu0 %v653
        %1689 = vmatpush1.msra.mxu0 %v652
        %1690 = vmatprep.subr.mxu0 %v656
        %1691 = vmatpush1.msra.mxu0 %v655
        %1692 = vmatprep.subr.mxu0 %v659
        %1693 = vmatpush1.msra.mxu0 %v658
        %1694 = vmatprep.subr.mxu0 %v662
        %1695 = vmatpush1.msra.mxu0 %v661
        %1696 = vmatprep.subr.mxu0 %v665
        %1697 = vmatpush1.msra.mxu0 %v664
        %1698 = vmatprep.subr.mxu0 0.0
        %1699 = vmatpush1.msra.mxu0 0.0
        %1700 = vmatprep.subr.mxu0 0.0
        %1701 = vmatpush1.msra.mxu0 0.0
        %1702 = vmatprep.subr.mxu0 0.0
        %1703 = vmatpush1.msra.mxu0 0.0
        %1704 = vmatprep.subr.mxu0 0.0
        %1705 = vmatpush1.msra.mxu0 0.0
        %1706 = vmatprep.subr.mxu0 0.0
        %1707 = vmatpush1.msra.mxu0 0.0
        %1708 = vmatprep.subr.mxu0 0.0
        %1709 = vmatpush1.msra.mxu0 0.0
        %1710 = vmatprep.subr.mxu0 0.0
        %1711 = vmatpush1.msra.mxu0 0.0
        %1712 = vmatprep.subr.mxu0 0.0
        %1713 = vmatpush1.msra.mxu0 0.0
        %1714 = vmatprep.subr.mxu0 0.0
        %1715 = vmatpush1.msra.mxu0 0.0
        %1716 = vmatprep.subr.mxu0 0.0
        %1717 = vmatpush1.msra.mxu0 0.0
        %1718 = vmatprep.subr.mxu0 0.0
        %1719 = vmatpush1.msra.mxu0 0.0
        %1720 = vmatprep.subr.mxu0 0.0
        %1721 = vmatpush1.msra.mxu0 0.0
        %1722 = vmatprep.subr.mxu0 0.0
        %1723 = vmatpush1.msra.mxu0 0.0
        %1724 = vmatprep.subr.mxu0 0.0
        %1725 = vmatpush1.msra.mxu0 0.0
        %1726 = vmatprep.subr.mxu0 0.0
        %1727 = vmatpush1.msra.mxu0 0.0
        %1728 = vmatprep.subr.mxu0 0.0
        %1729 = vmatpush1.msra.mxu0 0.0
        %1730 = vmatprep.mubr.f32.mxu0 0.0
        %1731 = vmatmul.mubr.f32.gmra.mrb[0].mxu0 %v1665
        %v1732 = vpop.f32.mrb[0].mxu0
        %v1733 = vadd.f32 0.0, %v1732
        %v1734 = vpop.f32.mrb[0].mxu0
        %v1735 = vadd.f32 0.0, %v1734
        %1736 = vdwg.mxu0
        %1737 = vmatprep.subr.mxu0 0.0
        %1738 = vmatpush1.msra.mxu0 %v621
        %1739 = vmatprep.subr.mxu0 0.0
        %1740 = vmatpush1.msra.mxu0 %v624
        %1741 = vmatprep.subr.mxu0 0.0
        %1742 = vmatpush1.msra.mxu0 %v627
        %1743 = vmatprep.subr.mxu0 0.0
        %1744 = vmatpush1.msra.mxu0 %v630
        %1745 = vmatprep.subr.mxu0 0.0
        %1746 = vmatpush1.msra.mxu0 %v633
        %1747 = vmatprep.subr.mxu0 0.0
        %1748 = vmatpush1.msra.mxu0 %v636
        %1749 = vmatprep.subr.mxu0 0.0
        %1750 = vmatpush1.msra.mxu0 %v639
        %1751 = vmatprep.subr.mxu0 0.0
        %1752 = vmatpush1.msra.mxu0 %v642
        %1753 = vmatprep.subr.mxu0 0.0
        %1754 = vmatpush1.msra.mxu0 %v645
        %1755 = vmatprep.subr.mxu0 0.0
        %1756 = vmatpush1.msra.mxu0 %v648
        %1757 = vmatprep.subr.mxu0 0.0
        %1758 = vmatpush1.msra.mxu0 %v651
        %1759 = vmatprep.subr.mxu0 0.0
        %1760 = vmatpush1.msra.mxu0 %v654
        %1761 = vmatprep.subr.mxu0 0.0
        %1762 = vmatpush1.msra.mxu0 %v657
        %1763 = vmatprep.subr.mxu0 0.0
        %1764 = vmatpush1.msra.mxu0 %v660
        %1765 = vmatprep.subr.mxu0 0.0
        %1766 = vmatpush1.msra.mxu0 %v663
        %1767 = vmatprep.subr.mxu0 0.0
        %1768 = vmatpush1.msra.mxu0 %v666
        %1769 = vmatprep.subr.mxu0 0.0
        %1770 = vmatpush1.msra.mxu0 0.0
        %1771 = vmatprep.subr.mxu0 0.0
        %1772 = vmatpush1.msra.mxu0 0.0
        %1773 = vmatprep.subr.mxu0 0.0
        %1774 = vmatpush1.msra.mxu0 0.0
        %1775 = vmatprep.subr.mxu0 0.0
        %1776 = vmatpush1.msra.mxu0 0.0
        %1777 = vmatprep.subr.mxu0 0.0
        %1778 = vmatpush1.msra.mxu0 0.0
        %1779 = vmatprep.subr.mxu0 0.0
        %1780 = vmatpush1.msra.mxu0 0.0
        %1781 = vmatprep.subr.mxu0 0.0
        %1782 = vmatpush1.msra.mxu0 0.0
        %1783 = vmatprep.subr.mxu0 0.0
        %1784 = vmatpush1.msra.mxu0 0.0
        %1785 = vmatprep.subr.mxu0 0.0
        %1786 = vmatpush1.msra.mxu0 0.0
        %1787 = vmatprep.subr.mxu0 0.0
        %1788 = vmatpush1.msra.mxu0 0.0
        %1789 = vmatprep.subr.mxu0 0.0
        %1790 = vmatpush1.msra.mxu0 0.0
        %1791 = vmatprep.subr.mxu0 0.0
        %1792 = vmatpush1.msra.mxu0 0.0
        %1793 = vmatprep.subr.mxu0 0.0
        %1794 = vmatpush1.msra.mxu0 0.0
        %1795 = vmatprep.subr.mxu0 0.0
        %1796 = vmatpush1.msra.mxu0 0.0
        %1797 = vmatprep.subr.mxu0 0.0
        %1798 = vmatpush1.msra.mxu0 0.0
        %1799 = vmatprep.subr.mxu0 0.0
        %1800 = vmatpush1.msra.mxu0 0.0
        %1801 = vmatprep.mubr.f32.mxu0 0.0
        %1802 = vmatmul.mubr.f32.gmra.mrb[0].mxu0 %v1665
        %v1803 = vpop.f32.mrb[0].mxu0
        %v1804 = vadd.f32 0.0, %v1803
        %v1805 = vpop.f32.mrb[0].mxu0
        %1806 = vdwg.mxu0
        %v1807 = vadd.f32 %v540, %v1733
        %v1808 = vadd.f32 %v528, %v1735
        %v1809 = vadd.f32 %v597, %v1804
        %v1810 = vxor.u32 %v1807, 2147483648
        %v1811 = vmul.f32 %v1810, 1.442695
        %v1812 = vpow.pop %v1811
        %v1813 = vadd.f32 %v1812, 1.0
        %v1814 = vrcp.pop %v1813
        %v1815 = vmul.f32 1.0, %v1814
        %v1816 = vadd.f32 %v1735, %v822
        %v1817 = vmul.f32 %v1815, %v1816
        %v1818 = vadd.f32 %v542, %v1817
        %v1819 = vtanh.pop %v1818
        %v1820 = vxor.u32 %v1808, 2147483648
        %v1821 = vmul.f32 %v1820, 1.442695
        %v1822 = vpow.pop %v1821
        %v1823 = vadd.f32 %v1822, 1.0
        %v1824 = vrcp.pop %v1823
        %v1825 = vmul.f32 1.0, %v1824
        %v1826 = vxor.u32 %v1809, 2147483648
        %v1827 = vmul.f32 %v1826, 1.442695
        %v1828 = vpow.pop %v1827
        %v1829 = vadd.f32 %v1828, 1.0
        %v1830 = vrcp.pop %v1829
        %v1831 = vmul.f32 1.0, %v1830
        %v1832 = vadd.f32 %v1804, %v822
        %v1833 = vmul.f32 %v1825, %v1832
        %v1834 = vadd.f32 %v597, %v1833
        %v1835 = vtanh.pop %v1834
        %v1836 = vsub.f32 1.0, %v1815
        %1838 = vrot.lane.b32.xlu0 %v1819, 64
        %v1839 = vpop.permute.xlu0 %1838
        %v1841 = vmul.f32 %v1836, %v1839
        %1843 = vrot.lane.b32.xlu0 %v1665, 64
        %v1844 = vpop.permute.xlu0 %1843
        %v1846 = vmul.f32 %v1815, %v1844
        %v1847 = vadd.f32 %v1841, %v1846
        %v1848 = vsub.f32 1.0, %v1831
        %1850 = vrot.lane.b32.xlu0 %v1835, 64
        %v1851 = vpop.permute.xlu0 %1850
        %v1853 = vmul.f32 %v1848, %v1851
        %v1854 = vmul.f32 %v1831, %v1844
        %v1855 = vadd.f32 %v1853, %v1854
        %1857 = vrot.lane.b32.xlu0 %v1847, 64
        %v1858 = vpop.permute.xlu0 %1857
        %1861 = vrot.lane.b32.xlu0 %v1855, 64
        %v1862 = vpop.permute.xlu0 %1861
        %v1864 = vsel %vm868, %v1858, %v1862
        %1865 = vmatprep.subr.mxu0 %v620
        %1866 = vmatpush1.msra.mxu0 %v619
        %1867 = vmatprep.subr.mxu0 %v623
        %1868 = vmatpush1.msra.mxu0 %v622
        %1869 = vmatprep.subr.mxu0 %v626
        %1870 = vmatpush1.msra.mxu0 %v625
        %1871 = vmatprep.subr.mxu0 %v629
        %1872 = vmatpush1.msra.mxu0 %v628
        %1873 = vmatprep.subr.mxu0 %v632
        %1874 = vmatpush1.msra.mxu0 %v631
        %1875 = vmatprep.subr.mxu0 %v635
        %1876 = vmatpush1.msra.mxu0 %v634
        %1877 = vmatprep.subr.mxu0 %v638
        %1878 = vmatpush1.msra.mxu0 %v637
        %1879 = vmatprep.subr.mxu0 %v641
        %1880 = vmatpush1.msra.mxu0 %v640
        %1881 = vmatprep.subr.mxu0 %v644
        %1882 = vmatpush1.msra.mxu0 %v643
        %1883 = vmatprep.subr.mxu0 %v647
        %1884 = vmatpush1.msra.mxu0 %v646
        %1885 = vmatprep.subr.mxu0 %v650
        %1886 = vmatpush1.msra.mxu0 %v649
        %1887 = vmatprep.subr.mxu0 %v653
        %1888 = vmatpush1.msra.mxu0 %v652
        %1889 = vmatprep.subr.mxu0 %v656
        %1890 = vmatpush1.msra.mxu0 %v655
        %1891 = vmatprep.subr.mxu0 %v659
        %1892 = vmatpush1.msra.mxu0 %v658
        %1893 = vmatprep.subr.mxu0 %v662
        %1894 = vmatpush1.msra.mxu0 %v661
        %1895 = vmatprep.subr.mxu0 %v665
        %1896 = vmatpush1.msra.mxu0 %v664
        %1897 = vmatprep.subr.mxu0 0.0
        %1898 = vmatpush1.msra.mxu0 0.0
        %1899 = vmatprep.subr.mxu0 0.0
        %1900 = vmatpush1.msra.mxu0 0.0
        %1901 = vmatprep.subr.mxu0 0.0
        %1902 = vmatpush1.msra.mxu0 0.0
        %1903 = vmatprep.subr.mxu0 0.0
        %1904 = vmatpush1.msra.mxu0 0.0
        %1905 = vmatprep.subr.mxu0 0.0
        %1906 = vmatpush1.msra.mxu0 0.0
        %1907 = vmatprep.subr.mxu0 0.0
        %1908 = vmatpush1.msra.mxu0 0.0
        %1909 = vmatprep.subr.mxu0 0.0
        %1910 = vmatpush1.msra.mxu0 0.0
        %1911 = vmatprep.subr.mxu0 0.0
        %1912 = vmatpush1.msra.mxu0 0.0
        %1913 = vmatprep.subr.mxu0 0.0
        %1914 = vmatpush1.msra.mxu0 0.0
        %1915 = vmatprep.subr.mxu0 0.0
        %1916 = vmatpush1.msra.mxu0 0.0
        %1917 = vmatprep.subr.mxu0 0.0
        %1918 = vmatpush1.msra.mxu0 0.0
        %1919 = vmatprep.subr.mxu0 0.0
        %1920 = vmatpush1.msra.mxu0 0.0
        %1921 = vmatprep.subr.mxu0 0.0
        %1922 = vmatpush1.msra.mxu0 0.0
        %1923 = vmatprep.subr.mxu0 0.0
        %1924 = vmatpush1.msra.mxu0 0.0
        %1925 = vmatprep.subr.mxu0 0.0
        %1926 = vmatpush1.msra.mxu0 0.0
        %1927 = vmatprep.subr.mxu0 0.0
        %1928 = vmatpush1.msra.mxu0 0.0
        %1929 = vmatprep.mubr.f32.mxu0 0.0
        %1930 = vmatmul.mubr.f32.gmra.mrb[0].mxu0 %v1864
        %v1931 = vpop.f32.mrb[0].mxu0
        %v1932 = vadd.f32 0.0, %v1931
        %v1933 = vpop.f32.mrb[0].mxu0
        %v1934 = vadd.f32 0.0, %v1933
        %1935 = vdwg.mxu0
        %1936 = vmatprep.subr.mxu0 0.0
        %1937 = vmatpush1.msra.mxu0 %v621
        %1938 = vmatprep.subr.mxu0 0.0
        %1939 = vmatpush1.msra.mxu0 %v624
        %1940 = vmatprep.subr.mxu0 0.0
        %1941 = vmatpush1.msra.mxu0 %v627
        %1942 = vmatprep.subr.mxu0 0.0
        %1943 = vmatpush1.msra.mxu0 %v630
        %1944 = vmatprep.subr.mxu0 0.0
        %1945 = vmatpush1.msra.mxu0 %v633
        %1946 = vmatprep.subr.mxu0 0.0
        %1947 = vmatpush1.msra.mxu0 %v636
        %1948 = vmatprep.subr.mxu0 0.0
        %1949 = vmatpush1.msra.mxu0 %v639
        %1950 = vmatprep.subr.mxu0 0.0
        %1951 = vmatpush1.msra.mxu0 %v642
        %1952 = vmatprep.subr.mxu0 0.0
        %1953 = vmatpush1.msra.mxu0 %v645
        %1954 = vmatprep.subr.mxu0 0.0
        %1955 = vmatpush1.msra.mxu0 %v648
        %1956 = vmatprep.subr.mxu0 0.0
        %1957 = vmatpush1.msra.mxu0 %v651
        %1958 = vmatprep.subr.mxu0 0.0
        %1959 = vmatpush1.msra.mxu0 %v654
        %1960 = vmatprep.subr.mxu0 0.0
        %1961 = vmatpush1.msra.mxu0 %v657
        %1962 = vmatprep.subr.mxu0 0.0
        %1963 = vmatpush1.msra.mxu0 %v660
        %1964 = vmatprep.subr.mxu0 0.0
        %1965 = vmatpush1.msra.mxu0 %v663
        %1966 = vmatprep.subr.mxu0 0.0
        %1967 = vmatpush1.msra.mxu0 %v666
        %1968 = vmatprep.subr.mxu0 0.0
        %1969 = vmatpush1.msra.mxu0 0.0
        %1970 = vmatprep.subr.mxu0 0.0
        %1971 = vmatpush1.msra.mxu0 0.0
        %1972 = vmatprep.subr.mxu0 0.0
        %1973 = vmatpush1.msra.mxu0 0.0
        %1974 = vmatprep.subr.mxu0 0.0
        %1975 = vmatpush1.msra.mxu0 0.0
        %1976 = vmatprep.subr.mxu0 0.0
        %1977 = vmatpush1.msra.mxu0 0.0
        %1978 = vmatprep.subr.mxu0 0.0
        %1979 = vmatpush1.msra.mxu0 0.0
        %1980 = vmatprep.subr.mxu0 0.0
        %1981 = vmatpush1.msra.mxu0 0.0
        %1982 = vmatprep.subr.mxu0 0.0
        %1983 = vmatpush1.msra.mxu0 0.0
        %1984 = vmatprep.subr.mxu0 0.0
        %1985 = vmatpush1.msra.mxu0 0.0
        %1986 = vmatprep.subr.mxu0 0.0
        %1987 = vmatpush1.msra.mxu0 0.0
        %1988 = vmatprep.subr.mxu0 0.0
        %1989 = vmatpush1.msra.mxu0 0.0
        %1990 = vmatprep.subr.mxu0 0.0
        %1991 = vmatpush1.msra.mxu0 0.0
        %1992 = vmatprep.subr.mxu0 0.0
        %1993 = vmatpush1.msra.mxu0 0.0
        %1994 = vmatprep.subr.mxu0 0.0
        %1995 = vmatpush1.msra.mxu0 0.0
        %1996 = vmatprep.subr.mxu0 0.0
        %1997 = vmatpush1.msra.mxu0 0.0
        %1998 = vmatprep.subr.mxu0 0.0
        %1999 = vmatpush1.msra.mxu0 0.0
        %2000 = vmatprep.mubr.f32.mxu0 0.0
        %2001 = vmatmul.mubr.f32.gmra.mrb[0].mxu0 %v1864
        %v2002 = vpop.f32.mrb[0].mxu0
        %v2003 = vadd.f32 0.0, %v2002
        %v2004 = vpop.f32.mrb[0].mxu0
        %2005 = vdwg.mxu0
        %v2006 = vadd.f32 %v546, %v1932
        %v2007 = vadd.f32 %v522, %v1934
        %v2008 = vadd.f32 %v592, %v2003
        %v2009 = vxor.u32 %v2006, 2147483648
        %v2010 = vmul.f32 %v2009, 1.442695
        %v2011 = vpow.pop %v2010
        %v2012 = vadd.f32 %v2011, 1.0
        %v2013 = vrcp.pop %v2012
        %v2014 = vmul.f32 1.0, %v2013
        %v2015 = vadd.f32 %v1934, %v822
        %v2016 = vmul.f32 %v2014, %v2015
        %v2017 = vadd.f32 %v548, %v2016
        %v2018 = vtanh.pop %v2017
        %v2019 = vxor.u32 %v2007, 2147483648
        %v2020 = vmul.f32 %v2019, 1.442695
        %v2021 = vpow.pop %v2020
        %v2022 = vadd.f32 %v2021, 1.0
        %v2023 = vrcp.pop %v2022
        %v2024 = vmul.f32 1.0, %v2023
        %v2025 = vxor.u32 %v2008, 2147483648
        %v2026 = vmul.f32 %v2025, 1.442695
        %v2027 = vpow.pop %v2026
        %v2028 = vadd.f32 %v2027, 1.0
        %v2029 = vrcp.pop %v2028
        %v2030 = vmul.f32 1.0, %v2029
        %v2031 = vadd.f32 %v2003, %v822
        %v2032 = vmul.f32 %v2024, %v2031
        %v2033 = vadd.f32 %v592, %v2032
        %v2034 = vtanh.pop %v2033
        %v2035 = vsub.f32 1.0, %v2014
        %2037 = vrot.lane.b32.xlu0 %v2018, 64
        %v2038 = vpop.permute.xlu0 %2037
        %v2040 = vmul.f32 %v2035, %v2038
        %2042 = vrot.lane.b32.xlu0 %v1864, 64
        %v2043 = vpop.permute.xlu0 %2042
        %v2045 = vmul.f32 %v2014, %v2043
        %v2046 = vadd.f32 %v2040, %v2045
        %v2047 = vsub.f32 1.0, %v2030
        %2049 = vrot.lane.b32.xlu0 %v2034, 64
        %v2050 = vpop.permute.xlu0 %2049
        %v2052 = vmul.f32 %v2047, %v2050
        %v2053 = vmul.f32 %v2030, %v2043
        %v2054 = vadd.f32 %v2052, %v2053
        %2056 = vrot.lane.b32.xlu0 %v2046, 64
        %v2057 = vpop.permute.xlu0 %2056
        %2060 = vrot.lane.b32.xlu0 %v2054, 64
        %v2061 = vpop.permute.xlu0 %2060
        %v2063 = vsel %vm868, %v2057, %v2061
        %2064 = vmatprep.subr.mxu0 %v620
        %2065 = vmatpush1.msra.mxu0 %v619
        %2066 = vmatprep.subr.mxu0 %v623
        %2067 = vmatpush1.msra.mxu0 %v622
        %2068 = vmatprep.subr.mxu0 %v626
        %2069 = vmatpush1.msra.mxu0 %v625
        %2070 = vmatprep.subr.mxu0 %v629
        %2071 = vmatpush1.msra.mxu0 %v628
        %2072 = vmatprep.subr.mxu0 %v632
        %2073 = vmatpush1.msra.mxu0 %v631
        %2074 = vmatprep.subr.mxu0 %v635
        %2075 = vmatpush1.msra.mxu0 %v634
        %2076 = vmatprep.subr.mxu0 %v638
        %2077 = vmatpush1.msra.mxu0 %v637
        %2078 = vmatprep.subr.mxu0 %v641
        %2079 = vmatpush1.msra.mxu0 %v640
        %2080 = vmatprep.subr.mxu0 %v644
        %2081 = vmatpush1.msra.mxu0 %v643
        %2082 = vmatprep.subr.mxu0 %v647
        %2083 = vmatpush1.msra.mxu0 %v646
        %2084 = vmatprep.subr.mxu0 %v650
        %2085 = vmatpush1.msra.mxu0 %v649
        %2086 = vmatprep.subr.mxu0 %v653
        %2087 = vmatpush1.msra.mxu0 %v652
        %2088 = vmatprep.subr.mxu0 %v656
        %2089 = vmatpush1.msra.mxu0 %v655
        %2090 = vmatprep.subr.mxu0 %v659
        %2091 = vmatpush1.msra.mxu0 %v658
        %2092 = vmatprep.subr.mxu0 %v662
        %2093 = vmatpush1.msra.mxu0 %v661
        %2094 = vmatprep.subr.mxu0 %v665
        %2095 = vmatpush1.msra.mxu0 %v664
        %2096 = vmatprep.subr.mxu0 0.0
        %2097 = vmatpush1.msra.mxu0 0.0
        %2098 = vmatprep.subr.mxu0 0.0
        %2099 = vmatpush1.msra.mxu0 0.0
        %2100 = vmatprep.subr.mxu0 0.0
        %2101 = vmatpush1.msra.mxu0 0.0
        %2102 = vmatprep.subr.mxu0 0.0
        %2103 = vmatpush1.msra.mxu0 0.0
        %2104 = vmatprep.subr.mxu0 0.0
        %2105 = vmatpush1.msra.mxu0 0.0
        %2106 = vmatprep.subr.mxu0 0.0
        %2107 = vmatpush1.msra.mxu0 0.0
        %2108 = vmatprep.subr.mxu0 0.0
        %2109 = vmatpush1.msra.mxu0 0.0
        %2110 = vmatprep.subr.mxu0 0.0
        %2111 = vmatpush1.msra.mxu0 0.0
        %2112 = vmatprep.subr.mxu0 0.0
        %2113 = vmatpush1.msra.mxu0 0.0
        %2114 = vmatprep.subr.mxu0 0.0
        %2115 = vmatpush1.msra.mxu0 0.0
        %2116 = vmatprep.subr.mxu0 0.0
        %2117 = vmatpush1.msra.mxu0 0.0
        %2118 = vmatprep.subr.mxu0 0.0
        %2119 = vmatpush1.msra.mxu0 0.0
        %2120 = vmatprep.subr.mxu0 0.0
        %2121 = vmatpush1.msra.mxu0 0.0
        %2122 = vmatprep.subr.mxu0 0.0
        %2123 = vmatpush1.msra.mxu0 0.0
        %2124 = vmatprep.subr.mxu0 0.0
        %2125 = vmatpush1.msra.mxu0 0.0
        %2126 = vmatprep.subr.mxu0 0.0
        %2127 = vmatpush1.msra.mxu0 0.0
        %2128 = vmatprep.mubr.f32.mxu0 0.0
        %2129 = vmatmul.mubr.f32.gmra.mrb[0].mxu0 %v2063
        %v2130 = vpop.f32.mrb[0].mxu0
        %v2131 = vadd.f32 0.0, %v2130
        %v2132 = vpop.f32.mrb[0].mxu0
        %v2133 = vadd.f32 0.0, %v2132
        %2134 = vdwg.mxu0
        %2135 = vmatprep.subr.mxu0 0.0
        %2136 = vmatpush1.msra.mxu0 %v621
        %2137 = vmatprep.subr.mxu0 0.0
        %2138 = vmatpush1.msra.mxu0 %v624
        %2139 = vmatprep.subr.mxu0 0.0
        %2140 = vmatpush1.msra.mxu0 %v627
        %2141 = vmatprep.subr.mxu0 0.0
        %2142 = vmatpush1.msra.mxu0 %v630
        %2143 = vmatprep.subr.mxu0 0.0
        %2144 = vmatpush1.msra.mxu0 %v633
        %2145 = vmatprep.subr.mxu0 0.0
        %2146 = vmatpush1.msra.mxu0 %v636
        %2147 = vmatprep.subr.mxu0 0.0
        %2148 = vmatpush1.msra.mxu0 %v639
        %2149 = vmatprep.subr.mxu0 0.0
        %2150 = vmatpush1.msra.mxu0 %v642
        %2151 = vmatprep.subr.mxu0 0.0
        %2152 = vmatpush1.msra.mxu0 %v645
        %2153 = vmatprep.subr.mxu0 0.0
        %2154 = vmatpush1.msra.mxu0 %v648
        %2155 = vmatprep.subr.mxu0 0.0
        %2156 = vmatpush1.msra.mxu0 %v651
        %2157 = vmatprep.subr.mxu0 0.0
        %2158 = vmatpush1.msra.mxu0 %v654
        %2159 = vmatprep.subr.mxu0 0.0
        %2160 = vmatpush1.msra.mxu0 %v657
        %2161 = vmatprep.subr.mxu0 0.0
        %2162 = vmatpush1.msra.mxu0 %v660
        %2163 = vmatprep.subr.mxu0 0.0
        %2164 = vmatpush1.msra.mxu0 %v663
        %2165 = vmatprep.subr.mxu0 0.0
        %2166 = vmatpush1.msra.mxu0 %v666
        %2167 = vmatprep.subr.mxu0 0.0
        %2168 = vmatpush1.msra.mxu0 0.0
        %2169 = vmatprep.subr.mxu0 0.0
        %2170 = vmatpush1.msra.mxu0 0.0
        %2171 = vmatprep.subr.mxu0 0.0
        %2172 = vmatpush1.msra.mxu0 0.0
        %2173 = vmatprep.subr.mxu0 0.0
        %2174 = vmatpush1.msra.mxu0 0.0
        %2175 = vmatprep.subr.mxu0 0.0
        %2176 = vmatpush1.msra.mxu0 0.0
        %2177 = vmatprep.subr.mxu0 0.0
        %2178 = vmatpush1.msra.mxu0 0.0
        %2179 = vmatprep.subr.mxu0 0.0
        %2180 = vmatpush1.msra.mxu0 0.0
        %2181 = vmatprep.subr.mxu0 0.0
        %2182 = vmatpush1.msra.mxu0 0.0
        %2183 = vmatprep.subr.mxu0 0.0
        %2184 = vmatpush1.msra.mxu0 0.0
        %2185 = vmatprep.subr.mxu0 0.0
        %2186 = vmatpush1.msra.mxu0 0.0
        %2187 = vmatprep.subr.mxu0 0.0
        %2188 = vmatpush1.msra.mxu0 0.0
        %2189 = vmatprep.subr.mxu0 0.0
        %2190 = vmatpush1.msra.mxu0 0.0
        %2191 = vmatprep.subr.mxu0 0.0
        %2192 = vmatpush1.msra.mxu0 0.0
        %2193 = vmatprep.subr.mxu0 0.0
        %2194 = vmatpush1.msra.mxu0 0.0
        %2195 = vmatprep.subr.mxu0 0.0
        %2196 = vmatpush1.msra.mxu0 0.0
        %2197 = vmatprep.subr.mxu0 0.0
        %2198 = vmatpush1.msra.mxu0 0.0
        %2199 = vmatprep.mubr.f32.mxu0 0.0
        %2200 = vmatmul.mubr.f32.gmra.mrb[0].mxu0 %v2063
        %v2201 = vpop.f32.mrb[0].mxu0
        %v2202 = vadd.f32 0.0, %v2201
        %v2203 = vpop.f32.mrb[0].mxu0
        %2204 = vdwg.mxu0
        %v2205 = vadd.f32 %v550, %v2131
        %v2206 = vadd.f32 %v518, %v2133
        %v2207 = vadd.f32 %v589, %v2202
        %v2208 = vxor.u32 %v2205, 2147483648
        %v2209 = vmul.f32 %v2208, 1.442695
        %v2210 = vpow.pop %v2209
        %v2211 = vadd.f32 %v2210, 1.0
        %v2212 = vrcp.pop %v2211
        %v2213 = vmul.f32 1.0, %v2212
        %v2214 = vadd.f32 %v2133, %v822
        %v2215 = vmul.f32 %v2213, %v2214
        %v2216 = vadd.f32 %v552, %v2215
        %v2217 = vtanh.pop %v2216
        %v2218 = vxor.u32 %v2206, 2147483648
        %v2219 = vmul.f32 %v2218, 1.442695
        %v2220 = vpow.pop %v2219
        %v2221 = vadd.f32 %v2220, 1.0
        %v2222 = vrcp.pop %v2221
        %v2223 = vmul.f32 1.0, %v2222
        %v2224 = vxor.u32 %v2207, 2147483648
        %v2225 = vmul.f32 %v2224, 1.442695
        %v2226 = vpow.pop %v2225
        %v2227 = vadd.f32 %v2226, 1.0
        %v2228 = vrcp.pop %v2227
        %v2229 = vmul.f32 1.0, %v2228
        %v2230 = vadd.f32 %v2202, %v822
        %v2231 = vmul.f32 %v2223, %v2230
        %v2232 = vadd.f32 %v589, %v2231
        %v2233 = vtanh.pop %v2232
        %v2234 = vsub.f32 1.0, %v2213
        %2236 = vrot.lane.b32.xlu0 %v2217, 64
        %v2237 = vpop.permute.xlu0 %2236
        %v2239 = vmul.f32 %v2234, %v2237
        %2241 = vrot.lane.b32.xlu0 %v2063, 64
        %v2242 = vpop.permute.xlu0 %2241
        %v2244 = vmul.f32 %v2213, %v2242
        %v2245 = vadd.f32 %v2239, %v2244
        %v2246 = vsub.f32 1.0, %v2229
        %2248 = vrot.lane.b32.xlu0 %v2233, 64
        %v2249 = vpop.permute.xlu0 %2248
        %v2251 = vmul.f32 %v2246, %v2249
        %v2252 = vmul.f32 %v2229, %v2242
        %v2253 = vadd.f32 %v2251, %v2252
        %2255 = vrot.lane.b32.xlu0 %v2245, 64
        %v2256 = vpop.permute.xlu0 %2255
        %2259 = vrot.lane.b32.xlu0 %v2253, 64
        %v2260 = vpop.permute.xlu0 %2259
        %v2262 = vsel %vm868, %v2256, %v2260
        %2263 = vst [vmem:[%s270] sm:$0xff] %v2262
        %s2264 = sand.u32 %s141, 1
        %s2265 = scalar_lea.sflag [#allocation4], %s2264
        %s2266 = sand.u32 %s141, 1
        %s2267 = smul.addr %s2266, 8
        %s2268 = scalar_lea.vmem [#allocation8], %s2267
        // Predicated region
        $region53: #{tpu_custom_call.1} parent=39 // pred_check
          %p2269 = pneg %p151
        $region54: #{tpu_custom_call.1} parent=39 // pred_check_branch
          %2271 = sbr.rel (%p2269) target = $region56
        $region55: #{tpu_custom_call.1} parent=39 // pred_region
          %s2273 = ssub.s32 128, 128
          %2274 = vsyncadd %s2265, %s2273
          %s2275 = smul.addr %s23, 128
          %s2276 = scalar_lea.hbm %s5, %s2275
          %s2278 = sshll.u32 %s2268, 4
          %s2279 = int_to_ptr.vmem [resolvable:$true] %s2278
          %2281 = dma.vmem_to_hbm [thread:$0]  %s2279, 128, %s2276, %s2265
        $region56: #{tpu_custom_call.1} parent=39 // pred_fallthru
          _
      $region40: #{tpu_custom_call.1} parent=5 // pred_fallthru
        _
      %p2282 = scmp.le.s32.totalorder 2, %s18
      // Predicated region
      $region57: #{tpu_custom_call.1} parent=5 // pred_check
        %p2283 = pneg %p2282
      $region58: #{tpu_custom_call.1} parent=5 // pred_check_branch
        %2285 = sbr.rel (%p2283) target = $region60
      $region59: #{tpu_custom_call.1} parent=5 // pred_region
        %s2286 = ssub.s32 %s18, 2
        // Predicated region
        $region61: #{tpu_custom_call.1} parent=59 // pred_check
          %p2287 = pneg %p157
        $region62: #{tpu_custom_call.1} parent=59 // pred_check_branch
          %2289 = sbr.rel (%p2287) target = $region64
        $region63: #{tpu_custom_call.1} parent=59 // pred_region
          %s2290 = sand.u32 %s142, 1
          %s2291 = scalar_lea.sflag [#allocation4], %s2290
          %s2292 = sand.u32 %s142, 1
          %s2293 = smul.addr %s2292, 8
          %s2294 = scalar_lea.vmem [#allocation8], %s2293
          %2295 = dma.done %s2291, 128
        $region64: #{tpu_custom_call.1} parent=59 // pred_fallthru
          _
      $region60: #{tpu_custom_call.1} parent=5 // pred_fallthru
        _
    $region6: #{tpu_custom_call.1} parent=1 // loop_footer
      %s22 = sadd.s32 1, %s18
    $region7: #{tpu_custom_call.1} parent=1 // loop_footer_branch
      %17 = sbr.rel target = $region3
    $region8: #{tpu_custom_call.1} parent=1 // loop_exit
      _
    %2296 = vsyncpa [#allocation3], 1
    %s2297 = scalar_lea.sflag [#allocation3], 1
    %2298 = vsyncpa %s2297, 1
    %2299 = vsyncpa [#allocation6], 1
    %2300 = vsyncpa [#allocation4], 1
    %s2301 = scalar_lea.sflag [#allocation4], 1
    %2302 = vsyncpa %s2301, 1

</llo_original>
